<compile_context>
chip_gen: v7x
topology: tpu7x:2x2x1
jax: 0.10.0
libtpu: 0.0.40
codegen_flags: <defaults>
</compile_context>

<pallas_src>
import math

import jax
import jax.numpy as jnp
from jax.experimental import pallas as pl
from jax.experimental.pallas import tpu as pltpu

LN_EPS = 1e-12          # HF-BERT style layernorm eps
LANE = 128
SUBLANE = 8

# Row indices inside the packed (MISC_ROWS, H) parameter slab.
R_BQ, R_BK, R_BV, R_BO, R_B2, R_G1, R_BE1, R_G2, R_BE2, R_BOUT, R_BD = range(11)
MISC_ROWS = 16          # padded to a sublane multiple of 8


def _round_up(a, m):
    return (a + m - 1) // m * m


# ----------------------------------------------------------------------------
# Fused kernel: encoder layer (backbone) + CLS select + classification head
# ----------------------------------------------------------------------------
def fused_sentiment_kernel(x_ref, maskb_ref, wqkv_ref, wo_ref, w1_ref, b1_ref,
                           w2_ref, misc_ref, wd_ref, wout_ref, out_ref):
    ROWS, H = x_ref.shape                     # flattened (b_tile*S, H)
    BT, _, S = maskb_ref.shape                # (b_tile, 1, S) additive mask bias
    FCP = wd_ref.shape[1]                     # lane-padded fc_hidden
    CP = wout_ref.shape[1]                    # lane-padded num_classes

    x = x_ref[...]                            # (ROWS, H) f32
    misc = misc_ref[...]                      # (16, H) f32 packed biases / LN params
    x_bf = x.astype(jnp.bfloat16)

    # --- fused QKV projection on the whole tile (one MXU pass) ---
    # 1/sqrt(H) attention scale is already folded into wq / bq at pack time.
    qkv = jnp.dot(x_bf, wqkv_ref[...], preferred_element_type=jnp.float32)
    q = qkv[:, 0 * H:1 * H] + misc[R_BQ:R_BQ + 1, :]
    k = qkv[:, 1 * H:2 * H] + misc[R_BK:R_BK + 1, :]
    v = qkv[:, 2 * H:3 * H] + misc[R_BV:R_BV + 1, :]

    # --- single-head self-attention, batched over the sequences in this tile ---
    # TODO(synk): for large S use flash-style kv tiling instead of dense scores.
    q3 = q.reshape(BT, S, H).astype(jnp.bfloat16)
    k3 = k.reshape(BT, S, H).astype(jnp.bfloat16)
    v3 = v.reshape(BT, S, H).astype(jnp.bfloat16)

    scores = jnp.einsum('bqd,bkd->bqk', q3, k3,
                        preferred_element_type=jnp.float32)
    scores = scores + maskb_ref[...]          # precomputed additive mask bias

    m = jnp.max(scores, axis=-1, keepdims=True)
    p = jnp.exp(scores - m)
    denom = jnp.sum(p, axis=-1, keepdims=True)
    p = p * pl.reciprocal(denom, approx=True)          # EUP slot

    attn3 = jnp.einsum('bqk,bkd->bqd', p.astype(jnp.bfloat16), v3,
                       preferred_element_type=jnp.float32)
    attn = attn3.reshape(ROWS, H)
    attn = jnp.dot(attn.astype(jnp.bfloat16), wo_ref[...],
                   preferred_element_type=jnp.float32) + misc[R_BO:R_BO + 1, :]

    # --- residual + layernorm 1 (f32 elementwise) ---
    h = x + attn
    mu = jnp.mean(h, axis=-1, keepdims=True)
    var = jnp.mean((h - mu) ** 2, axis=-1, keepdims=True)
    h = (h - mu) * jax.lax.rsqrt(var + LN_EPS)
    h = h * misc[R_G1:R_G1 + 1, :] + misc[R_BE1:R_BE1 + 1, :]

    # --- feed-forward ---
    f = jnp.dot(h.astype(jnp.bfloat16), w1_ref[...],
                preferred_element_type=jnp.float32) + b1_ref[...]
    f = jnp.maximum(f, 0.0)
    f = jnp.dot(f.astype(jnp.bfloat16), w2_ref[...],
                preferred_element_type=jnp.float32) + misc[R_B2:R_B2 + 1, :]

    # --- residual + layernorm 2 ---
    y = h + f
    mu = jnp.mean(y, axis=-1, keepdims=True)
    var = jnp.mean((y - mu) ** 2, axis=-1, keepdims=True)
    y = (y - mu) * jax.lax.rsqrt(var + LN_EPS)
    y = y * misc[R_G2:R_G2 + 1, :] + misc[R_BE2:R_BE2 + 1, :]

    # --- in-kernel CLS selection (token 0 of each sequence) BEFORE the head ---
    y3 = y.reshape(BT, S, H)
    cls = jax.lax.slice_in_dim(y3, 0, 1, axis=1).reshape(BT, H)

    # --- classification head (dropout = identity in eval mode) ---
    hd = jnp.dot(cls.astype(jnp.bfloat16), wd_ref[...],
                 preferred_element_type=jnp.float32) + misc[R_BD:R_BD + 1, :FCP]
    hd = jnp.maximum(hd, 0.0)                                   # ReLU
    logits = jnp.dot(hd.astype(jnp.bfloat16), wout_ref[...],
                     preferred_element_type=jnp.float32) + misc[R_BOUT:R_BOUT + 1, :CP]
    out_ref[...] = logits                     # lane-dense (b_tile, CP)


def run_fused(xf, mask_bias, kp, b_tile, s_pad):
    BS, H = xf.shape
    B_pad = mask_bias.shape[0]
    FF = kp["w1"].shape[1]
    FCP = kp["wd"].shape[1]
    CP = kp["wout"].shape[1]
    rows_per_tile = b_tile * s_pad
    grid = (B_pad // b_tile,)

    def const(shape):
        zero = (0,) * len(shape)
        return pl.BlockSpec(shape, lambda i, _z=zero: _z)   # weights: VMEM-resident

    return pl.pallas_call(
        fused_sentiment_kernel,
        out_shape=jax.ShapeDtypeStruct((B_pad, CP), jnp.float32),
        grid_spec=pltpu.PrefetchScalarGridSpec(
            num_scalar_prefetch=0,
            grid=grid,
            in_specs=[
                pl.BlockSpec((rows_per_tile, H), lambda i: (i, 0)),   # x, streamed
                pl.BlockSpec((b_tile, 1, s_pad), lambda i: (i, 0, 0)),  # mask bias
                const((H, 3 * H)),            # wqkv (bf16, scale folded into wq)
                const((H, H)),                # wo   (bf16)
                const((H, FF)),               # w1   (bf16)
                const((1, FF)),               # b1
                const((FF, H)),               # w2   (bf16)
                const((MISC_ROWS, H)),        # packed biases / LN params / head biases
                const((H, FCP)),              # dense_w, lane-padded fc_hidden (bf16)
                const((FCP, CP)),             # out_w, lane-padded classes (bf16)
            ],
            out_specs=pl.BlockSpec((b_tile, CP), lambda i: (i, 0)),
        ),
        compiler_params=pltpu.CompilerParams(
            dimension_semantics=("parallel",),          # v7x megacore; no-op on v5e/v6e
            vmem_limit_bytes=32 * 1024 * 1024,
        ),
    )(xf, mask_bias, kp["wqkv"], kp["wo"], kp["w1"], kp["b1"], kp["w2"],
      kp["misc"], kp["wd"], kp["wout"])


# ----------------------------------------------------------------------------
# Full forward pass (glue in plain JAX: padding, embedding lookup, final slice)
# ----------------------------------------------------------------------------
def sentiment_forward(params, kp, input_ids, attention_mask, num_classes,
                      target_rows=256):
    B, S = input_ids.shape
    H = params["tok_emb"].shape[1]

    # Pad S to a sublane multiple of 8 (keeps the (BS,H)<->(B,S,H) reshapes on
    # tile boundaries) and B to a multiple of the batch tile.
    S_pad = _round_up(S, SUBLANE)
    b_tile = max(SUBLANE, (max(target_rows // S_pad, 1)) // SUBLANE * SUBLANE)
    b_tile = min(b_tile, _round_up(B, SUBLANE))
    B_pad = _round_up(B, b_tile)

    ids = jnp.zeros((B_pad, S_pad), jnp.int32).at[:B, :S].set(input_ids)
    mask = jnp.zeros((B_pad, S_pad), jnp.float32)
    mask = mask.at[:B, :S].set(attention_mask.astype(jnp.float32))
    if B_pad > B:
        mask = mask.at[B:, 0].set(1.0)        # keep padded rows' softmax well-posed
    mask_bias = (1.0 - mask)[:, None, :] * (-1e9)       # (B_pad, 1, S_pad)

    pos = jnp.zeros((S_pad, H), jnp.float32).at[:S].set(params["pos_emb"])
    # TODO(synk): embedding gather stays in plain JAX (not in-kernel).
    x = jnp.take(params["tok_emb"], ids, axis=0) + pos[None, :, :]
    xf = x.reshape(B_pad * S_pad, H).astype(jnp.float32)

    logits_pad = run_fused(xf, mask_bias, kp, b_tile, S_pad)    # (B_pad, CP)
    return logits_pad[:B, :num_classes]


# ----------------------------------------------------------------------------
# Parameter init + packing into kernel operands
# ----------------------------------------------------------------------------
def init_params(key, vocab, seq, hidden, ff, fc_hidden, num_classes):
    ks = jax.random.split(key, 24)
    n = lambda k, shape: 0.02 * jax.random.normal(k, shape, dtype=jnp.float32)
    return {
        "tok_emb": n(ks[0], (vocab, hidden)),
        "pos_emb": n(ks[1], (seq, hidden)),
        "wq": n(ks[2], (hidden, hidden)), "bq": n(ks[10], (hidden,)),
        "wk": n(ks[3], (hidden, hidden)), "bk": n(ks[11], (hidden,)),
        "wv": n(ks[4], (hidden, hidden)), "bv": n(ks[12], (hidden,)),
        "wo": n(ks[5], (hidden, hidden)), "bo": n(ks[13], (hidden,)),
        "w1": n(ks[6], (hidden, ff)),     "b1": n(ks[14], (ff,)),
        "w2": n(ks[7], (ff, hidden)),     "b2": n(ks[15], (hidden,)),
        "g1": jnp.ones((hidden,), jnp.float32), "be1": jnp.zeros((hidden,), jnp.float32),
        "g2": jnp.ones((hidden,), jnp.float32), "be2": jnp.zeros((hidden,), jnp.float32),
        # classification head (the actual SentimentModel layers)
        "dense_w": n(ks[8], (hidden, fc_hidden)), "dense_b": n(ks[16], (fc_hidden,)),
        "out_w": n(ks[9], (fc_hidden, num_classes)), "out_b": n(ks[17], (num_classes,)),
    }


def pack_kernel_params(p):
    H = p["wq"].shape[0]
    FC = p["dense_w"].shape[1]
    C = p["out_w"].shape[1]
    FCP = _round_up(FC, LANE)                 # lane-dense padded fc_hidden
    CP = _round_up(C, LANE)                   # lane-dense padded class dim
    assert FCP <= H and CP <= H, "head bias rows must fit the (*, H) misc slab"

    # Fold the 1/sqrt(H) attention scale into wq / bq (pack-time constant fold).
    scale = 1.0 / math.sqrt(H)
    wq = p["wq"] * scale
    bq = p["bq"] * scale

    wqkv = jnp.concatenate([wq, p["wk"], p["wv"]], axis=1).astype(jnp.bfloat16)
    wd = (jnp.zeros((H, FCP), jnp.float32)
          .at[:, :FC].set(p["dense_w"])).astype(jnp.bfloat16)
    wout = (jnp.zeros((FCP, CP), jnp.float32)
            .at[:FC, :C].set(p["out_w"])).astype(jnp.bfloat16)

    misc = jnp.zeros((MISC_ROWS, H), jnp.float32)
    misc = misc.at[R_BQ].set(bq)
    misc = misc.at[R_BK].set(p["bk"])
    misc = misc.at[R_BV].set(p["bv"])
    misc = misc.at[R_BO].set(p["bo"])
    misc = misc.at[R_B2].set(p["b2"])
    misc = misc.at[R_G1].set(p["g1"])
    misc = misc.at[R_BE1].set(p["be1"])
    misc = misc.at[R_G2].set(p["g2"])
    misc = misc.at[R_BE2].set(p["be2"])
    misc = misc.at[R_BOUT, :C].set(p["out_b"])
    misc = misc.at[R_BD, :FC].set(p["dense_b"])

    return {
        "wqkv": wqkv,
        "wo": p["wo"].astype(jnp.bfloat16),
        "w1": p["w1"].astype(jnp.bfloat16),
        "b1": p["b1"].reshape(1, -1),
        "w2": p["w2"].astype(jnp.bfloat16),
        "misc": misc,
        "wd": wd,
        "wout": wout,
    }


if __name__ == "__main__":
    B, S, V = 2, 8, 64          # batch, seq, vocab
    H, FF = 128, 512            # backbone hidden size, FFN size
    FC, C = 32, 3               # fc_hidden_size, num_classes

    key = jax.random.PRNGKey(0)
    pkey, ikey = jax.random.split(key)
    params = init_params(pkey, V, S, H, FF, FC, C)
    kernel_params = pack_kernel_params(params)

    input_ids = jax.random.randint(ikey, (B, S), 0, V, dtype=jnp.int32)
    attention_mask = jnp.array(
        [[1, 1, 1, 1, 1, 1, 1, 1],
         [1, 1, 1, 1, 1, 1, 0, 0]], dtype=jnp.int32)

    logits = sentiment_forward(params, kernel_params, input_ids, attention_mask, C)
    jax.block_until_ready(logits)
    assert logits.shape == (B, C) and logits.dtype == jnp.float32
    assert bool(jnp.all(jnp.isfinite(logits)))
    print("KERNEL_OK")
</pallas_src>

<mosaic_0001>
module attributes {stable_mosaic.version = 11 : i64} {
  func.func @fused_sentiment_kernel(%arg0: i32, %arg1: memref<64x128xf32, #tpu.memory_space<vmem>>, %arg2: memref<8x1x8xf32, #tpu.memory_space<vmem>>, %arg3: memref<128x384xbf16, #tpu.memory_space<vmem>>, %arg4: memref<128x128xbf16, #tpu.memory_space<vmem>>, %arg5: memref<128x512xbf16, #tpu.memory_space<vmem>>, %arg6: memref<1x512xf32, #tpu.memory_space<vmem>>, %arg7: memref<512x128xbf16, #tpu.memory_space<vmem>>, %arg8: memref<16x128xf32, #tpu.memory_space<vmem>>, %arg9: memref<128x128xbf16, #tpu.memory_space<vmem>>, %arg10: memref<128x128xbf16, #tpu.memory_space<vmem>>, %arg11: memref<8x128xf32, #tpu.memory_space<vmem>>) attributes {dimension_semantics = [#tpu.dimension_semantics<parallel>], iteration_bounds = array<i64: 1>, scalar_prefetch = 0 : i64, scratch_operands = 0 : i64, tpu.core_type = #tpu.core_type<tc>, window_params = [{transform_indices = @transform_0, window_bounds = array<i64: 64, 128>}, {transform_indices = @transform_1, window_bounds = array<i64: 8, 1, 8>}, {pipeline_mode = #tpu.pipeline_mode<synchronous>, transform_indices = @transform_2, window_bounds = array<i64: 128, 384>}, {pipeline_mode = #tpu.pipeline_mode<synchronous>, transform_indices = @transform_3, window_bounds = array<i64: 128, 128>}, {pipeline_mode = #tpu.pipeline_mode<synchronous>, transform_indices = @transform_4, window_bounds = array<i64: 128, 512>}, {pipeline_mode = #tpu.pipeline_mode<synchronous>, transform_indices = @transform_5, window_bounds = array<i64: 1, 512>}, {pipeline_mode = #tpu.pipeline_mode<synchronous>, transform_indices = @transform_6, window_bounds = array<i64: 512, 128>}, {pipeline_mode = #tpu.pipeline_mode<synchronous>, transform_indices = @transform_7, window_bounds = array<i64: 16, 128>}, {pipeline_mode = #tpu.pipeline_mode<synchronous>, transform_indices = @transform_8, window_bounds = array<i64: 128, 128>}, {pipeline_mode = #tpu.pipeline_mode<synchronous>, transform_indices = @transform_9, window_bounds = array<i64: 128, 128>}, {transform_indices = @transform_10, window_bounds = array<i64: 8, 128>}]} {
    %c0 = arith.constant 0 : index
    %c0_0 = arith.constant 0 : index
    %0 = vector.load %arg1[%c0, %c0_0] : memref<64x128xf32, #tpu.memory_space<vmem>>, vector<64x128xf32>
    %c0_1 = arith.constant 0 : index
    %c0_2 = arith.constant 0 : index
    %1 = vector.load %arg8[%c0_1, %c0_2] : memref<16x128xf32, #tpu.memory_space<vmem>>, vector<16x128xf32>
    %2 = arith.truncf %0 : vector<64x128xf32> to vector<64x128xbf16>
    %c0_3 = arith.constant 0 : index
    %c0_4 = arith.constant 0 : index
    %3 = vector.load %arg3[%c0_3, %c0_4] : memref<128x384xbf16, #tpu.memory_space<vmem>>, vector<128x384xbf16>
    %cst = arith.constant dense<0.000000e+00> : vector<64x384xf32>
    %4 = tpu.matmul %2, %3, %cst {dimension_numbers = #tpu.dot_dimension_numbers<[1], [0], [0], [1], [0, 0, 1, 1], [], []>} : vector<64x128xbf16>, vector<128x384xbf16>, vector<64x384xf32> -> vector<64x384xf32>
    %5 = vector.extract_strided_slice %4 {offsets = [0, 0], sizes = [64, 128], strides = [1, 1]} : vector<64x384xf32> to vector<64x128xf32>
    %6 = vector.extract_strided_slice %1 {offsets = [0, 0], sizes = [1, 128], strides = [1, 1]} : vector<16x128xf32> to vector<1x128xf32>
    %7 = vector.broadcast %6 : vector<1x128xf32> to vector<64x128xf32>
    %8 = arith.addf %5, %7 : vector<64x128xf32>
    %9 = vector.extract_strided_slice %4 {offsets = [0, 128], sizes = [64, 128], strides = [1, 1]} : vector<64x384xf32> to vector<64x128xf32>
    %10 = vector.extract_strided_slice %1 {offsets = [1, 0], sizes = [1, 128], strides = [1, 1]} : vector<16x128xf32> to vector<1x128xf32>
    %11 = vector.broadcast %10 : vector<1x128xf32> to vector<64x128xf32>
    %12 = arith.addf %9, %11 : vector<64x128xf32>
    %13 = vector.extract_strided_slice %4 {offsets = [0, 256], sizes = [64, 128], strides = [1, 1]} : vector<64x384xf32> to vector<64x128xf32>
    %14 = vector.extract_strided_slice %1 {offsets = [2, 0], sizes = [1, 128], strides = [1, 1]} : vector<16x128xf32> to vector<1x128xf32>
    %15 = vector.broadcast %14 : vector<1x128xf32> to vector<64x128xf32>
    %16 = arith.addf %13, %15 : vector<64x128xf32>
    %17 = vector.shape_cast %8 : vector<64x128xf32> to vector<8x8x128xf32>
    %18 = arith.truncf %17 : vector<8x8x128xf32> to vector<8x8x128xbf16>
    %19 = vector.shape_cast %12 : vector<64x128xf32> to vector<8x8x128xf32>
    %20 = arith.truncf %19 : vector<8x8x128xf32> to vector<8x8x128xbf16>
    %21 = vector.shape_cast %16 : vector<64x128xf32> to vector<8x8x128xf32>
    %22 = arith.truncf %21 : vector<8x8x128xf32> to vector<8x8x128xbf16>
    "tpu.trace_start"() <{level = 10 : i32, message = "bqd,bkd->bqk"}> : () -> ()
    %cst_5 = arith.constant dense<0.000000e+00> : vector<8x8x8xf32>
    %23 = tpu.matmul %18, %20, %cst_5 {dimension_numbers = #tpu.dot_dimension_numbers<[2], [2], [1], [1], [0, 0, 0, 1, 1, 1], [0], [0]>} : vector<8x8x128xbf16>, vector<8x8x128xbf16>, vector<8x8x8xf32> -> vector<8x8x8xf32>
    "tpu.trace_stop"() : () -> ()
    %c0_6 = arith.constant 0 : index
    %c0_7 = arith.constant 0 : index
    %c0_8 = arith.constant 0 : index
    %24 = vector.load %arg2[%c0_6, %c0_7, %c0_8] : memref<8x1x8xf32, #tpu.memory_space<vmem>>, vector<8x1x8xf32>
    %25 = vector.broadcast %24 : vector<8x1x8xf32> to vector<8x8x8xf32>
    %26 = arith.addf %23, %25 : vector<8x8x8xf32>
    %cst_9 = arith.constant dense<0xFF800000> : vector<8x8xf32>
    %27 = vector.multi_reduction <maximumf>, %26, %cst_9 [2] : vector<8x8x8xf32> to vector<8x8xf32>
    %28 = vector.shape_cast %27 : vector<8x8xf32> to vector<8x8x1xf32>
    %29 = vector.broadcast %28 : vector<8x8x1xf32> to vector<8x8x8xf32>
    %30 = arith.subf %26, %29 : vector<8x8x8xf32>
    %31 = math.exp %30 : vector<8x8x8xf32>
    %cst_10 = arith.constant dense<0.000000e+00> : vector<8x8xf32>
    %32 = vector.multi_reduction <add>, %31, %cst_10 [2] : vector<8x8x8xf32> to vector<8x8xf32>
    %33 = vector.shape_cast %32 : vector<8x8xf32> to vector<8x8x1xf32>
    %34 = tpu.reciprocal %33 {approx = true} : vector<8x8x1xf32> -> vector<8x8x1xf32>
    %35 = vector.broadcast %34 : vector<8x8x1xf32> to vector<8x8x8xf32>
    %36 = arith.mulf %31, %35 : vector<8x8x8xf32>
    %37 = arith.truncf %36 : vector<8x8x8xf32> to vector<8x8x8xbf16>
    "tpu.trace_start"() <{level = 10 : i32, message = "bqk,bkd->bqd"}> : () -> ()
    %cst_11 = arith.constant dense<0.000000e+00> : vector<8x8x128xf32>
    %38 = tpu.matmul %37, %22, %cst_11 {dimension_numbers = #tpu.dot_dimension_numbers<[2], [1], [1], [2], [0, 0, 0, 1, 1, 2], [0], [0]>} : vector<8x8x8xbf16>, vector<8x8x128xbf16>, vector<8x8x128xf32> -> vector<8x8x128xf32>
    "tpu.trace_stop"() : () -> ()
    %39 = vector.shape_cast %38 : vector<8x8x128xf32> to vector<64x128xf32>
    %40 = arith.truncf %39 : vector<64x128xf32> to vector<64x128xbf16>
    %c0_12 = arith.constant 0 : index
    %c0_13 = arith.constant 0 : index
    %41 = vector.load %arg4[%c0_12, %c0_13] : memref<128x128xbf16, #tpu.memory_space<vmem>>, vector<128x128xbf16>
    %cst_14 = arith.constant dense<0.000000e+00> : vector<64x128xf32>
    %42 = tpu.matmul %40, %41, %cst_14 {dimension_numbers = #tpu.dot_dimension_numbers<[1], [0], [0], [1], [0, 0, 1, 1], [], []>} : vector<64x128xbf16>, vector<128x128xbf16>, vector<64x128xf32> -> vector<64x128xf32>
    %43 = vector.extract_strided_slice %1 {offsets = [3, 0], sizes = [1, 128], strides = [1, 1]} : vector<16x128xf32> to vector<1x128xf32>
    %44 = vector.broadcast %43 : vector<1x128xf32> to vector<64x128xf32>
    %45 = arith.addf %42, %44 : vector<64x128xf32>
    %46 = arith.addf %0, %45 : vector<64x128xf32>
    %cst_15 = arith.constant dense<0.000000e+00> : vector<64xf32>
    %47 = vector.multi_reduction <add>, %46, %cst_15 [1] : vector<64x128xf32> to vector<64xf32>
    %48 = vector.shape_cast %47 : vector<64xf32> to vector<64x1xf32>
    %cst_16 = arith.constant 1.280000e+02 : f32
    %49 = vector.broadcast %cst_16 : f32 to vector<64x1xf32>
    %50 = arith.divf %48, %49 : vector<64x1xf32>
    %51 = vector.broadcast %50 : vector<64x1xf32> to vector<64x128xf32>
    %52 = arith.subf %46, %51 : vector<64x128xf32>
    %53 = arith.mulf %52, %52 : vector<64x128xf32>
    %cst_17 = arith.constant dense<0.000000e+00> : vector<64xf32>
    %54 = vector.multi_reduction <add>, %53, %cst_17 [1] : vector<64x128xf32> to vector<64xf32>
    %55 = vector.shape_cast %54 : vector<64xf32> to vector<64x1xf32>
    %cst_18 = arith.constant 1.280000e+02 : f32
    %56 = vector.broadcast %cst_18 : f32 to vector<64x1xf32>
    %57 = arith.divf %55, %56 : vector<64x1xf32>
    %58 = vector.broadcast %50 : vector<64x1xf32> to vector<64x128xf32>
    %59 = arith.subf %46, %58 : vector<64x128xf32>
    %cst_19 = arith.constant 9.99999996E-13 : f32
    %60 = vector.broadcast %cst_19 : f32 to vector<64x1xf32>
    %61 = arith.addf %57, %60 : vector<64x1xf32>
    %62 = math.rsqrt %61 : vector<64x1xf32>
    %63 = vector.broadcast %62 : vector<64x1xf32> to vector<64x128xf32>
    %64 = arith.mulf %59, %63 : vector<64x128xf32>
    %65 = vector.extract_strided_slice %1 {offsets = [5, 0], sizes = [1, 128], strides = [1, 1]} : vector<16x128xf32> to vector<1x128xf32>
    %66 = vector.broadcast %65 : vector<1x128xf32> to vector<64x128xf32>
    %67 = arith.mulf %64, %66 : vector<64x128xf32>
    %68 = vector.extract_strided_slice %1 {offsets = [6, 0], sizes = [1, 128], strides = [1, 1]} : vector<16x128xf32> to vector<1x128xf32>
    %69 = vector.broadcast %68 : vector<1x128xf32> to vector<64x128xf32>
    %70 = arith.addf %67, %69 : vector<64x128xf32>
    %71 = arith.truncf %70 : vector<64x128xf32> to vector<64x128xbf16>
    %c0_20 = arith.constant 0 : index
    %c0_21 = arith.constant 0 : index
    %72 = vector.load %arg5[%c0_20, %c0_21] : memref<128x512xbf16, #tpu.memory_space<vmem>>, vector<128x512xbf16>
    %cst_22 = arith.constant dense<0.000000e+00> : vector<64x512xf32>
    %73 = tpu.matmul %71, %72, %cst_22 {dimension_numbers = #tpu.dot_dimension_numbers<[1], [0], [0], [1], [0, 0, 1, 1], [], []>} : vector<64x128xbf16>, vector<128x512xbf16>, vector<64x512xf32> -> vector<64x512xf32>
    %c0_23 = arith.constant 0 : index
    %c0_24 = arith.constant 0 : index
    %74 = vector.load %arg6[%c0_23, %c0_24] : memref<1x512xf32, #tpu.memory_space<vmem>>, vector<1x512xf32>
    %75 = vector.broadcast %74 : vector<1x512xf32> to vector<64x512xf32>
    %76 = arith.addf %73, %75 : vector<64x512xf32>
    %cst_25 = arith.constant 0.000000e+00 : f32
    %77 = vector.broadcast %cst_25 : f32 to vector<64x512xf32>
    %78 = arith.maximumf %76, %77 : vector<64x512xf32>
    %79 = arith.truncf %78 : vector<64x512xf32> to vector<64x512xbf16>
    %c0_26 = arith.constant 0 : index
    %c0_27 = arith.constant 0 : index
    %80 = vector.load %arg7[%c0_26, %c0_27] : memref<512x128xbf16, #tpu.memory_space<vmem>>, vector<512x128xbf16>
    %cst_28 = arith.constant dense<0.000000e+00> : vector<64x128xf32>
    %81 = tpu.matmul %79, %80, %cst_28 {dimension_numbers = #tpu.dot_dimension_numbers<[1], [0], [0], [1], [0, 0, 1, 1], [], []>} : vector<64x512xbf16>, vector<512x128xbf16>, vector<64x128xf32> -> vector<64x128xf32>
    %82 = vector.extract_strided_slice %1 {offsets = [4, 0], sizes = [1, 128], strides = [1, 1]} : vector<16x128xf32> to vector<1x128xf32>
    %83 = vector.broadcast %82 : vector<1x128xf32> to vector<64x128xf32>
    %84 = arith.addf %81, %83 : vector<64x128xf32>
    %85 = arith.addf %70, %84 : vector<64x128xf32>
    %cst_29 = arith.constant dense<0.000000e+00> : vector<64xf32>
    %86 = vector.multi_reduction <add>, %85, %cst_29 [1] : vector<64x128xf32> to vector<64xf32>
    %87 = vector.shape_cast %86 : vector<64xf32> to vector<64x1xf32>
    %cst_30 = arith.constant 1.280000e+02 : f32
    %88 = vector.broadcast %cst_30 : f32 to vector<64x1xf32>
    %89 = arith.divf %87, %88 : vector<64x1xf32>
    %90 = vector.broadcast %89 : vector<64x1xf32> to vector<64x128xf32>
    %91 = arith.subf %85, %90 : vector<64x128xf32>
    %92 = arith.mulf %91, %91 : vector<64x128xf32>
    %cst_31 = arith.constant dense<0.000000e+00> : vector<64xf32>
    %93 = vector.multi_reduction <add>, %92, %cst_31 [1] : vector<64x128xf32> to vector<64xf32>
    %94 = vector.shape_cast %93 : vector<64xf32> to vector<64x1xf32>
    %cst_32 = arith.constant 1.280000e+02 : f32
    %95 = vector.broadcast %cst_32 : f32 to vector<64x1xf32>
    %96 = arith.divf %94, %95 : vector<64x1xf32>
    %97 = vector.broadcast %89 : vector<64x1xf32> to vector<64x128xf32>
    %98 = arith.subf %85, %97 : vector<64x128xf32>
    %cst_33 = arith.constant 9.99999996E-13 : f32
    %99 = vector.broadcast %cst_33 : f32 to vector<64x1xf32>
    %100 = arith.addf %96, %99 : vector<64x1xf32>
    %101 = math.rsqrt %100 : vector<64x1xf32>
    %102 = vector.broadcast %101 : vector<64x1xf32> to vector<64x128xf32>
    %103 = arith.mulf %98, %102 : vector<64x128xf32>
    %104 = vector.extract_strided_slice %1 {offsets = [7, 0], sizes = [1, 128], strides = [1, 1]} : vector<16x128xf32> to vector<1x128xf32>
    %105 = vector.broadcast %104 : vector<1x128xf32> to vector<64x128xf32>
    %106 = arith.mulf %103, %105 : vector<64x128xf32>
    %107 = vector.extract_strided_slice %1 {offsets = [8, 0], sizes = [1, 128], strides = [1, 1]} : vector<16x128xf32> to vector<1x128xf32>
    %108 = vector.broadcast %107 : vector<1x128xf32> to vector<64x128xf32>
    %109 = arith.addf %106, %108 : vector<64x128xf32>
    %110 = vector.shape_cast %109 : vector<64x128xf32> to vector<8x8x128xf32>
    %111 = vector.extract_strided_slice %110 {offsets = [0, 0, 0], sizes = [8, 1, 128], strides = [1, 1, 1]} : vector<8x8x128xf32> to vector<8x1x128xf32>
    %112 = vector.shape_cast %111 : vector<8x1x128xf32> to vector<8x128xf32>
    %113 = arith.truncf %112 : vector<8x128xf32> to vector<8x128xbf16>
    %c0_34 = arith.constant 0 : index
    %c0_35 = arith.constant 0 : index
    %114 = vector.load %arg9[%c0_34, %c0_35] : memref<128x128xbf16, #tpu.memory_space<vmem>>, vector<128x128xbf16>
    %cst_36 = arith.constant dense<0.000000e+00> : vector<8x128xf32>
    %115 = tpu.matmul %113, %114, %cst_36 {dimension_numbers = #tpu.dot_dimension_numbers<[1], [0], [0], [1], [0, 0, 1, 1], [], []>} : vector<8x128xbf16>, vector<128x128xbf16>, vector<8x128xf32> -> vector<8x128xf32>
    %116 = vector.extract_strided_slice %1 {offsets = [10, 0], sizes = [1, 128], strides = [1, 1]} : vector<16x128xf32> to vector<1x128xf32>
    %117 = vector.broadcast %116 : vector<1x128xf32> to vector<8x128xf32>
    %118 = arith.addf %115, %117 : vector<8x128xf32>
    %cst_37 = arith.constant 0.000000e+00 : f32
    %119 = vector.broadcast %cst_37 : f32 to vector<8x128xf32>
    %120 = arith.maximumf %118, %119 : vector<8x128xf32>
    %121 = arith.truncf %120 : vector<8x128xf32> to vector<8x128xbf16>
    %c0_38 = arith.constant 0 : index
    %c0_39 = arith.constant 0 : index
    %122 = vector.load %arg10[%c0_38, %c0_39] : memref<128x128xbf16, #tpu.memory_space<vmem>>, vector<128x128xbf16>
    %cst_40 = arith.constant dense<0.000000e+00> : vector<8x128xf32>
    %123 = tpu.matmul %121, %122, %cst_40 {dimension_numbers = #tpu.dot_dimension_numbers<[1], [0], [0], [1], [0, 0, 1, 1], [], []>} : vector<8x128xbf16>, vector<128x128xbf16>, vector<8x128xf32> -> vector<8x128xf32>
    %124 = vector.extract_strided_slice %1 {offsets = [9, 0], sizes = [1, 128], strides = [1, 1]} : vector<16x128xf32> to vector<1x128xf32>
    %125 = vector.broadcast %124 : vector<1x128xf32> to vector<8x128xf32>
    %126 = arith.addf %123, %125 : vector<8x128xf32>
    %c0_41 = arith.constant 0 : index
    %c0_42 = arith.constant 0 : index
    %127 = vector.load %arg11[%c0_41, %c0_42] : memref<8x128xf32, #tpu.memory_space<vmem>>, vector<8x128xf32>
    tpu.vector_store %arg11[%c0_41, %c0_42], %126 {strides = array<i32>} : memref<8x128xf32, #tpu.memory_space<vmem>>, vector<8x128xf32>,
    return
  }
  func.func @transform_0(%arg0: i32) -> (i32, i32) {
    %c0_i32 = arith.constant 0 : i32
    %c0_i32_0 = arith.constant 0 : i32
    return %arg0, %c0_i32 : i32, i32
  }
  func.func @transform_1(%arg0: i32) -> (i32, i32, i32) {
    %c0_i32 = arith.constant 0 : i32
    %c0_i32_0 = arith.constant 0 : i32
    %c0_i32_1 = arith.constant 0 : i32
    return %arg0, %c0_i32, %c0_i32_0 : i32, i32, i32
  }
  func.func @transform_2(%arg0: i32) -> (i32, i32) {
    %c0_i32 = arith.constant 0 : i32
    %c0_i32_0 = arith.constant 0 : i32
    %c0_i32_1 = arith.constant 0 : i32
    return %c0_i32, %c0_i32_0 : i32, i32
  }
  func.func @transform_3(%arg0: i32) -> (i32, i32) {
    %c0_i32 = arith.constant 0 : i32
    %c0_i32_0 = arith.constant 0 : i32
    %c0_i32_1 = arith.constant 0 : i32
    return %c0_i32, %c0_i32_0 : i32, i32
  }
  func.func @transform_4(%arg0: i32) -> (i32, i32) {
    %c0_i32 = arith.constant 0 : i32
    %c0_i32_0 = arith.constant 0 : i32
    %c0_i32_1 = arith.constant 0 : i32
    return %c0_i32, %c0_i32_0 : i32, i32
  }
  func.func @transform_5(%arg0: i32) -> (i32, i32) {
    %c0_i32 = arith.constant 0 : i32
    %c0_i32_0 = arith.constant 0 : i32
    %c0_i32_1 = arith.constant 0 : i32
    return %c0_i32, %c0_i32_0 : i32, i32
  }
  func.func @transform_6(%arg0: i32) -> (i32, i32) {
    %c0_i32 = arith.constant 0 : i32
    %c0_i32_0 = arith.constant 0 : i32
    %c0_i32_1 = arith.constant 0 : i32
    return %c0_i32, %c0_i32_0 : i32, i32
  }
  func.func @transform_7(%arg0: i32) -> (i32, i32) {
    %c0_i32 = arith.constant 0 : i32
    %c0_i32_0 = arith.constant 0 : i32
    %c0_i32_1 = arith.constant 0 : i32
    return %c0_i32, %c0_i32_0 : i32, i32
  }
  func.func @transform_8(%arg0: i32) -> (i32, i32) {
    %c0_i32 = arith.constant 0 : i32
    %c0_i32_0 = arith.constant 0 : i32
    %c0_i32_1 = arith.constant 0 : i32
    return %c0_i32, %c0_i32_0 : i32, i32
  }
  func.func @transform_9(%arg0: i32) -> (i32, i32) {
    %c0_i32 = arith.constant 0 : i32
    %c0_i32_0 = arith.constant 0 : i32
    %c0_i32_1 = arith.constant 0 : i32
    return %c0_i32, %c0_i32_0 : i32, i32
  }
  func.func @transform_10(%arg0: i32) -> (i32, i32) {
    %c0_i32 = arith.constant 0 : i32
    %c0_i32_0 = arith.constant 0 : i32
    return %arg0, %c0_i32 : i32, i32
  }
}

</mosaic_0001>

<llo_original>
// kernel: tpu_custom_call.1
$region0: #{tpu_custom_call.1}
  #allocation0 [shape = 'u32[]', space=smem, size = 0x4, offset = 0x4, fixed_abs, tag = 'smem constant byte address 0x4 - core index']
  #allocation1 [shape = 'u32[144,128]{1,0:T(1,128)}', space=vmem, size = 0x12000, scoped, tag = 'internal scratch']
  %s0 = inlined_call_operand.hbm [shape: f32[64,128], index: 0, kind: input, shape index: {}]
  %s1 = inlined_call_operand.hbm [shape: f32[8,1,8], index: 1, kind: input, shape index: {}]
  %s2 = inlined_call_operand.hbm [shape: bf16[128,384], index: 2, kind: input, shape index: {}]
  %s3 = inlined_call_operand.hbm [shape: bf16[128,128], index: 3, kind: input, shape index: {}]
  %s4 = inlined_call_operand.hbm [shape: bf16[128,512], index: 4, kind: input, shape index: {}]
  %s5 = inlined_call_operand.vmem [shape: f32[1,512], index: 5, kind: input, shape index: {}]
  %s6 = inlined_call_operand.hbm [shape: bf16[512,128], index: 6, kind: input, shape index: {}]
  %s7 = inlined_call_operand.vmem [shape: f32[16,128], index: 7, kind: input, shape index: {}]
  %s8 = inlined_call_operand.hbm [shape: bf16[128,128], index: 8, kind: input, shape index: {}]
  %s9 = inlined_call_operand.hbm [shape: bf16[128,128], index: 9, kind: input, shape index: {}]
  %s10 = inlined_call_operand.hbm [shape: f32[8,128], index: 10, kind: output, shape index: {}]
  %s11 = sld [smem:[#allocation0]]
  $region82: #{tpu_custom_call.1} parent=0
    _
  %s13 = ssub.s32 1, %s11
  %s14 = scalar_select 0, %s13, %s11
  $region1: #{tpu_custom_call.1} parent=0
    #allocation2 [shape = 'u8[32768]{0}', space=vmem, size = 0x8000, scoped, tag = 'input window, operand 0, single buffered']
    #allocation3 [shape = 's32[1]{0}', space=sflag, size = 0x4, scoped, tag = 'scoped memory for tpu_custom_call.1']
    #allocation4 [shape = 's32[1]{0}', space=sflag, size = 0x4, scoped, tag = 'scoped memory for tpu_custom_call.1']
    #allocation5 [shape = 'u8[4096]{0}', space=vmem, size = 0x1000, scoped, tag = 'input window, operand 1, single buffered']
    #allocation6 [shape = 's32[1]{0}', space=sflag, size = 0x4, scoped, tag = 'scoped memory for tpu_custom_call.1']
    #allocation7 [shape = 'u8[98304]{0}', space=vmem, size = 0x18000, scoped, tag = 'input window, operand 2, single buffered']
    #allocation8 [shape = 'u8[32768]{0}', space=vmem, size = 0x8000, scoped, tag = 'input window, operand 3, single buffered']
    #allocation9 [shape = 's32[1]{0}', space=sflag, size = 0x4, scoped, tag = 'scoped memory for tpu_custom_call.1']
    #allocation10 [shape = 'u8[131072]{0}', space=vmem, size = 0x20000, scoped, tag = 'input window, operand 4, single buffered']
    #allocation11 [shape = 'u8[131072]{0}', space=vmem, size = 0x20000, scoped, tag = 'input window, operand 6, single buffered']
    #allocation12 [shape = 's32[1]{0}', space=sflag, size = 0x4, scoped, tag = 'scoped memory for tpu_custom_call.1']
    #allocation13 [shape = 'u8[32768]{0}', space=vmem, size = 0x8000, scoped, tag = 'input window, operand 8, single buffered']
    #allocation14 [shape = 'u8[32768]{0}', space=vmem, size = 0x8000, scoped, tag = 'input window, operand 9, single buffered']
    #allocation15 [shape = 's32[1]{0}', space=sflag, size = 0x4, scoped, tag = 'scoped memory for tpu_custom_call.1']
    #allocation16 [shape = 'u8[4096]{0}', space=vmem, size = 0x1000, scoped, tag = 'output window, operand 0, single buffered']
    %15 = vsyncpa [#allocation3], 0
    %16 = vsyncpa [#allocation6], 0
    %17 = vsyncpa [#allocation9], 0
    %18 = vsyncpa [#allocation12], 0
    %19 = vsyncpa [#allocation15], 0
    %20 = vsyncpa [#allocation4], 0
    // Predicated region
    $region2: #{tpu_custom_call.1} parent=1 // pred_check
      _
    $region3: #{tpu_custom_call.1} parent=1 // pred_check_branch
      %22 = sbr.rel (0) target = $region5
    $region4: #{tpu_custom_call.1} parent=1 // pred_region
      %s24 = ssub.s32 1024, 1024
      %25 = vsyncadd [#allocation3], %s24
      %s26 = sshll.u32 [#allocation2], 4
      %s27 = int_to_ptr.vmem [resolvable:$true] %s26
      %32 = dma.hbm_to_vmem [thread:$0]  %s0, 1024, %s27, [#allocation3], 128, 128, 8
    $region5: #{tpu_custom_call.1} parent=1 // pred_fallthru
      _
    // Predicated region
    $region6: #{tpu_custom_call.1} parent=1 // pred_check
      _
    $region7: #{tpu_custom_call.1} parent=1 // pred_check_branch
      %34 = sbr.rel (0) target = $region9
    $region8: #{tpu_custom_call.1} parent=1 // pred_region
      %s36 = ssub.s32 128, 128
      %37 = vsyncadd [#allocation6], %s36
      %s38 = sshll.u32 [#allocation5], 4
      %s39 = int_to_ptr.vmem [resolvable:$true] %s38
      %44 = dma.hbm_to_vmem [thread:$0]  %s1, 128, %s39, [#allocation6], 16, 16, 1
    $region9: #{tpu_custom_call.1} parent=1 // pred_fallthru
      _
    // Predicated region
    $region10: #{tpu_custom_call.1} parent=1 // pred_check
      _
    $region11: #{tpu_custom_call.1} parent=1 // pred_check_branch
      %46 = sbr.rel (0) target = $region13
    $region12: #{tpu_custom_call.1} parent=1 // pred_region
      %s48 = ssub.s32 3072, 3072
      %49 = vsyncadd [#allocation6], %s48
      %s50 = sshll.u32 [#allocation7], 4
      %s51 = int_to_ptr.vmem [resolvable:$true] %s50
      %56 = dma.hbm_to_vmem [thread:$0]  %s2, 3072, %s51, [#allocation6], 192, 192, 12
    $region13: #{tpu_custom_call.1} parent=1 // pred_fallthru
      _
    // Predicated region
    $region14: #{tpu_custom_call.1} parent=1 // pred_check
      _
    $region15: #{tpu_custom_call.1} parent=1 // pred_check_branch
      %58 = sbr.rel (0) target = $region17
    $region16: #{tpu_custom_call.1} parent=1 // pred_region
      %s60 = ssub.s32 1024, 1024
      %61 = vsyncadd [#allocation9], %s60
      %s62 = sshll.u32 [#allocation8], 4
      %s63 = int_to_ptr.vmem [resolvable:$true] %s62
      %68 = dma.hbm_to_vmem [thread:$0]  %s3, 1024, %s63, [#allocation9], 64, 64, 4
    $region17: #{tpu_custom_call.1} parent=1 // pred_fallthru
      _
    // Predicated region
    $region18: #{tpu_custom_call.1} parent=1 // pred_check
      _
    $region19: #{tpu_custom_call.1} parent=1 // pred_check_branch
      %70 = sbr.rel (0) target = $region21
    $region20: #{tpu_custom_call.1} parent=1 // pred_region
      %s72 = ssub.s32 4096, 4096
      %73 = vsyncadd [#allocation9], %s72
      %s74 = sshll.u32 [#allocation10], 4
      %s75 = int_to_ptr.vmem [resolvable:$true] %s74
      %80 = dma.hbm_to_vmem [thread:$0]  %s4, 4096, %s75, [#allocation9], 256, 256, 16
    $region21: #{tpu_custom_call.1} parent=1 // pred_fallthru
      _
    // Predicated region
    $region22: #{tpu_custom_call.1} parent=1 // pred_check
      _
    $region23: #{tpu_custom_call.1} parent=1 // pred_check_branch
      %82 = sbr.rel (0) target = $region25
    $region24: #{tpu_custom_call.1} parent=1 // pred_region
      _
    $region25: #{tpu_custom_call.1} parent=1 // pred_fallthru
      _
    // Predicated region
    $region26: #{tpu_custom_call.1} parent=1 // pred_check
      _
    $region27: #{tpu_custom_call.1} parent=1 // pred_check_branch
      %84 = sbr.rel (0) target = $region29
    $region28: #{tpu_custom_call.1} parent=1 // pred_region
      %s86 = ssub.s32 4096, 4096
      %87 = vsyncadd [#allocation12], %s86
      %s88 = sshll.u32 [#allocation11], 4
      %s89 = int_to_ptr.vmem [resolvable:$true] %s88
      %94 = dma.hbm_to_vmem [thread:$0]  %s6, 4096, %s89, [#allocation12], 64, 64, 4
    $region29: #{tpu_custom_call.1} parent=1 // pred_fallthru
      _
    // Predicated region
    $region30: #{tpu_custom_call.1} parent=1 // pred_check
      _
    $region31: #{tpu_custom_call.1} parent=1 // pred_check_branch
      %96 = sbr.rel (0) target = $region33
    $region32: #{tpu_custom_call.1} parent=1 // pred_region
      _
    $region33: #{tpu_custom_call.1} parent=1 // pred_fallthru
      _
    // Predicated region
    $region34: #{tpu_custom_call.1} parent=1 // pred_check
      _
    $region35: #{tpu_custom_call.1} parent=1 // pred_check_branch
      %98 = sbr.rel (0) target = $region37
    $region36: #{tpu_custom_call.1} parent=1 // pred_region
      %s100 = ssub.s32 1024, 1024
      %101 = vsyncadd [#allocation12], %s100
      %s102 = sshll.u32 [#allocation13], 4
      %s103 = int_to_ptr.vmem [resolvable:$true] %s102
      %108 = dma.hbm_to_vmem [thread:$0]  %s8, 1024, %s103, [#allocation12], 64, 64, 4
    $region37: #{tpu_custom_call.1} parent=1 // pred_fallthru
      _
    // Predicated region
    $region38: #{tpu_custom_call.1} parent=1 // pred_check
      _
    $region39: #{tpu_custom_call.1} parent=1 // pred_check_branch
      %110 = sbr.rel (0) target = $region41
    $region40: #{tpu_custom_call.1} parent=1 // pred_region
      %s112 = ssub.s32 1024, 1024
      %113 = vsyncadd [#allocation15], %s112
      %s114 = sshll.u32 [#allocation14], 4
      %s115 = int_to_ptr.vmem [resolvable:$true] %s114
      %120 = dma.hbm_to_vmem [thread:$0]  %s9, 1024, %s115, [#allocation15], 64, 64, 4
    $region41: #{tpu_custom_call.1} parent=1 // pred_fallthru
      _
    // Predicated region
    $region42: #{tpu_custom_call.1} parent=1 // pred_check
      _
    $region43: #{tpu_custom_call.1} parent=1 // pred_check_branch
      %122 = sbr.rel (0) target = $region45
    $region44: #{tpu_custom_call.1} parent=1 // pred_region
      %123 = dma.done [#allocation3], 1024
    $region45: #{tpu_custom_call.1} parent=1 // pred_fallthru
      _
    // Predicated region
    $region46: #{tpu_custom_call.1} parent=1 // pred_check
      _
    $region47: #{tpu_custom_call.1} parent=1 // pred_check_branch
      %125 = sbr.rel (0) target = $region49
    $region48: #{tpu_custom_call.1} parent=1 // pred_region
      %126 = dma.done [#allocation6], 128
    $region49: #{tpu_custom_call.1} parent=1 // pred_fallthru
      _
    // Predicated region
    $region50: #{tpu_custom_call.1} parent=1 // pred_check
      _
    $region51: #{tpu_custom_call.1} parent=1 // pred_check_branch
      %128 = sbr.rel (0) target = $region53
    $region52: #{tpu_custom_call.1} parent=1 // pred_region
      %129 = dma.done [#allocation6], 3072
    $region53: #{tpu_custom_call.1} parent=1 // pred_fallthru
      _
    // Predicated region
    $region54: #{tpu_custom_call.1} parent=1 // pred_check
      _
    $region55: #{tpu_custom_call.1} parent=1 // pred_check_branch
      %131 = sbr.rel (0) target = $region57
    $region56: #{tpu_custom_call.1} parent=1 // pred_region
      %132 = dma.done [#allocation9], 1024
    $region57: #{tpu_custom_call.1} parent=1 // pred_fallthru
      _
    // Predicated region
    $region58: #{tpu_custom_call.1} parent=1 // pred_check
      _
    $region59: #{tpu_custom_call.1} parent=1 // pred_check_branch
      %134 = sbr.rel (0) target = $region61
    $region60: #{tpu_custom_call.1} parent=1 // pred_region
      %135 = dma.done [#allocation9], 4096
    $region61: #{tpu_custom_call.1} parent=1 // pred_fallthru
      _
    // Predicated region
    $region62: #{tpu_custom_call.1} parent=1 // pred_check
      _
    $region63: #{tpu_custom_call.1} parent=1 // pred_check_branch
      %137 = sbr.rel (0) target = $region65
    $region64: #{tpu_custom_call.1} parent=1 // pred_region
      %138 = dma.done [#allocation12], 4096
    $region65: #{tpu_custom_call.1} parent=1 // pred_fallthru
      _
    // Predicated region
    $region66: #{tpu_custom_call.1} parent=1 // pred_check
      _
    $region67: #{tpu_custom_call.1} parent=1 // pred_check_branch
      %140 = sbr.rel (0) target = $region69
    $region68: #{tpu_custom_call.1} parent=1 // pred_region
      %141 = dma.done [#allocation12], 1024
    $region69: #{tpu_custom_call.1} parent=1 // pred_fallthru
      _
    // Predicated region
    $region70: #{tpu_custom_call.1} parent=1 // pred_check
      _
    $region71: #{tpu_custom_call.1} parent=1 // pred_check_branch
      %143 = sbr.rel (0) target = $region73
    $region72: #{tpu_custom_call.1} parent=1 // pred_region
      %144 = dma.done [#allocation15], 1024
    $region73: #{tpu_custom_call.1} parent=1 // pred_fallthru
      _
    %v146 = vld [vmem:[#allocation2] sm:$0xff]
    %v147 = vld [vmem:[#allocation2 + $0x8] sm:$0xff]
    %v148 = vld [vmem:[#allocation2 + $0x10] sm:$0xff]
    %v149 = vld [vmem:[#allocation2 + $0x18] sm:$0xff]
    %v150 = vld [vmem:[#allocation2 + $0x20] sm:$0xff]
    %v151 = vld [vmem:[#allocation2 + $0x28] sm:$0xff]
    %v152 = vld [vmem:[#allocation2 + $0x30] sm:$0xff]
    %v153 = vld [vmem:[#allocation2 + $0x38] sm:$0xff]
    %v154 = vld [vmem:[%s7] sm:$0xff]
    %v155 = vld [vmem:[%s7 + $0x8] sm:$0xff]
    %v156 = vpack.c.bf16 %v147, %v146
    %v157 = vpack.c.bf16 %v149, %v148
    %v158 = vpack.c.bf16 %v151, %v150
    %v159 = vpack.c.bf16 %v153, %v152
    %v160 = vld [vmem:[#allocation7] sm:$0xff]
    %v161 = vld [vmem:[#allocation7 + $0x8] sm:$0xf]
    %v162 = vld [vmem:[#allocation7 + $0xc] sm:$0xff]
    %v163 = vld [vmem:[#allocation7 + $0x14] sm:$0xf]
    %v164 = vld [vmem:[#allocation7 + $0x18] sm:$0xff]
    %v165 = vld [vmem:[#allocation7 + $0x20] sm:$0xf]
    %v166 = vld [vmem:[#allocation7 + $0x24] sm:$0xff]
    %v167 = vld [vmem:[#allocation7 + $0x2c] sm:$0xf]
    %v168 = vld [vmem:[#allocation7 + $0x30] sm:$0xff]
    %v169 = vld [vmem:[#allocation7 + $0x38] sm:$0xf]
    %v170 = vld [vmem:[#allocation7 + $0x3c] sm:$0xff]
    %v171 = vld [vmem:[#allocation7 + $0x44] sm:$0xf]
    %v172 = vld [vmem:[#allocation7 + $0x48] sm:$0xff]
    %v173 = vld [vmem:[#allocation7 + $0x50] sm:$0xf]
    %v174 = vld [vmem:[#allocation7 + $0x54] sm:$0xff]
    %v175 = vld [vmem:[#allocation7 + $0x5c] sm:$0xf]
    %v176 = vld [vmem:[#allocation7 + $0x60] sm:$0xff]
    %v177 = vld [vmem:[#allocation7 + $0x68] sm:$0xf]
    %v178 = vld [vmem:[#allocation7 + $0x6c] sm:$0xff]
    %v179 = vld [vmem:[#allocation7 + $0x74] sm:$0xf]
    %v180 = vld [vmem:[#allocation7 + $0x78] sm:$0xff]
    %v181 = vld [vmem:[#allocation7 + $0x80] sm:$0xf]
    %v182 = vld [vmem:[#allocation7 + $0x84] sm:$0xff]
    %v183 = vld [vmem:[#allocation7 + $0x8c] sm:$0xf]
    %v184 = vld [vmem:[#allocation7 + $0x90] sm:$0xff]
    %v185 = vld [vmem:[#allocation7 + $0x98] sm:$0xf]
    %v186 = vld [vmem:[#allocation7 + $0x9c] sm:$0xff]
    %v187 = vld [vmem:[#allocation7 + $0xa4] sm:$0xf]
    %v188 = vld [vmem:[#allocation7 + $0xa8] sm:$0xff]
    %v189 = vld [vmem:[#allocation7 + $0xb0] sm:$0xf]
    %v190 = vld [vmem:[#allocation7 + $0xb4] sm:$0xff]
    %v191 = vld [vmem:[#allocation7 + $0xbc] sm:$0xf]
    %v224 = vunpack.c.l.b16 %v160
    %v225 = vunpack.c.h.b16 %v160
    %v226 = vunpack.c.l.b16 %v161
    %v227 = vunpack.c.l.b16 %v162
    %v228 = vunpack.c.h.b16 %v162
    %v229 = vunpack.c.l.b16 %v163
    %v230 = vunpack.c.l.b16 %v164
    %v231 = vunpack.c.h.b16 %v164
    %v232 = vunpack.c.l.b16 %v165
    %v233 = vunpack.c.l.b16 %v166
    %v234 = vunpack.c.h.b16 %v166
    %v235 = vunpack.c.l.b16 %v167
    %v236 = vunpack.c.l.b16 %v168
    %v237 = vunpack.c.h.b16 %v168
    %v238 = vunpack.c.l.b16 %v169
    %v239 = vunpack.c.l.b16 %v170
    %v240 = vunpack.c.h.b16 %v170
    %v241 = vunpack.c.l.b16 %v171
    %v242 = vunpack.c.l.b16 %v172
    %v243 = vunpack.c.h.b16 %v172
    %v244 = vunpack.c.l.b16 %v173
    %v245 = vunpack.c.l.b16 %v174
    %v246 = vunpack.c.h.b16 %v174
    %v247 = vunpack.c.l.b16 %v175
    %v248 = vunpack.c.l.b16 %v176
    %v249 = vunpack.c.h.b16 %v176
    %v250 = vunpack.c.l.b16 %v177
    %v251 = vunpack.c.l.b16 %v178
    %v252 = vunpack.c.h.b16 %v178
    %v253 = vunpack.c.l.b16 %v179
    %v254 = vunpack.c.l.b16 %v180
    %v255 = vunpack.c.h.b16 %v180
    %v256 = vunpack.c.l.b16 %v181
    %v257 = vunpack.c.l.b16 %v182
    %v258 = vunpack.c.h.b16 %v182
    %v259 = vunpack.c.l.b16 %v183
    %v260 = vunpack.c.l.b16 %v184
    %v261 = vunpack.c.h.b16 %v184
    %v262 = vunpack.c.l.b16 %v185
    %v263 = vunpack.c.l.b16 %v186
    %v264 = vunpack.c.h.b16 %v186
    %v265 = vunpack.c.l.b16 %v187
    %v266 = vunpack.c.l.b16 %v188
    %v267 = vunpack.c.h.b16 %v188
    %v268 = vunpack.c.l.b16 %v189
    %v269 = vunpack.c.l.b16 %v190
    %v270 = vunpack.c.h.b16 %v190
    %v271 = vunpack.c.l.b16 %v191
    %v272 = vpack.c.b16 %v227, %v224
    %v273 = vpack.c.b16 %v228, %v225
    %v274 = vpack.c.b16 %v229, %v226
    %v275 = vpack.c.b16 %v233, %v230
    %v276 = vpack.c.b16 %v234, %v231
    %v277 = vpack.c.b16 %v235, %v232
    %v278 = vpack.c.b16 %v239, %v236
    %v279 = vpack.c.b16 %v240, %v237
    %v280 = vpack.c.b16 %v241, %v238
    %v281 = vpack.c.b16 %v245, %v242
    %v282 = vpack.c.b16 %v246, %v243
    %v283 = vpack.c.b16 %v247, %v244
    %v284 = vpack.c.b16 %v251, %v248
    %v285 = vpack.c.b16 %v252, %v249
    %v286 = vpack.c.b16 %v253, %v250
    %v287 = vpack.c.b16 %v257, %v254
    %v288 = vpack.c.b16 %v258, %v255
    %v289 = vpack.c.b16 %v259, %v256
    %v290 = vpack.c.b16 %v263, %v260
    %v291 = vpack.c.b16 %v264, %v261
    %v292 = vpack.c.b16 %v265, %v262
    %v293 = vpack.c.b16 %v269, %v266
    %v294 = vpack.c.b16 %v270, %v267
    %v295 = vpack.c.b16 %v271, %v268
    %320 = vmatprep.subr.bf16.mxu0 %v273
    %321 = vmatpush1.bf16.msra.mxu0 %v272
    %322 = vmatprep.subr.bf16.mxu0 %v276
    %323 = vmatpush1.bf16.msra.mxu0 %v275
    %324 = vmatprep.subr.bf16.mxu0 %v279
    %325 = vmatpush1.bf16.msra.mxu0 %v278
    %326 = vmatprep.subr.bf16.mxu0 %v282
    %327 = vmatpush1.bf16.msra.mxu0 %v281
    %328 = vmatprep.subr.bf16.mxu0 %v285
    %329 = vmatpush1.bf16.msra.mxu0 %v284
    %330 = vmatprep.subr.bf16.mxu0 %v288
    %331 = vmatpush1.bf16.msra.mxu0 %v287
    %332 = vmatprep.subr.bf16.mxu0 %v291
    %333 = vmatpush1.bf16.msra.mxu0 %v290
    %334 = vmatprep.subr.bf16.mxu0 %v294
    %335 = vmatpush1.bf16.msra.mxu0 %v293
    %336 = vmatprep.subr.bf16.mxu0 0
    %337 = vmatpush1.bf16.msra.mxu0 0
    %338 = vmatprep.subr.bf16.mxu0 0
    %339 = vmatpush1.bf16.msra.mxu0 0
    %340 = vmatprep.subr.bf16.mxu0 0
    %341 = vmatpush1.bf16.msra.mxu0 0
    %342 = vmatprep.subr.bf16.mxu0 0
    %343 = vmatpush1.bf16.msra.mxu0 0
    %344 = vmatprep.subr.bf16.mxu0 0
    %345 = vmatpush1.bf16.msra.mxu0 0
    %346 = vmatprep.subr.bf16.mxu0 0
    %347 = vmatpush1.bf16.msra.mxu0 0
    %348 = vmatprep.subr.bf16.mxu0 0
    %349 = vmatpush1.bf16.msra.mxu0 0
    %350 = vmatprep.subr.bf16.mxu0 0
    %351 = vmatpush1.bf16.msra.mxu0 0
    %352 = vmatprep.mubr.bf16.mxu0 0
    %353 = vmatmul.mubr.bf16.gmra.mrb[0].mxu0 %v156
    %v354 = vpop.f32.mrb[0].mxu0
    %v355 = vadd.f32 0.0, %v354
    %v356 = vpop.f32.mrb[0].mxu0
    %v357 = vadd.f32 0.0, %v356
    %v358 = vpop.f32.mrb[0].mxu0
    %v359 = vadd.f32 0.0, %v358
    %v360 = vpop.f32.mrb[0].mxu0
    %v361 = vadd.f32 0.0, %v360
    %362 = vmatprep.mubr.bf16.mxu0 0
    %363 = vmatmul.mubr.bf16.gmra.mrb[0].mxu0 %v157
    %v364 = vpop.f32.mrb[0].mxu0
    %v365 = vadd.f32 0.0, %v364
    %v366 = vpop.f32.mrb[0].mxu0
    %v367 = vadd.f32 0.0, %v366
    %v368 = vpop.f32.mrb[0].mxu0
    %v369 = vadd.f32 0.0, %v368
    %v370 = vpop.f32.mrb[0].mxu0
    %v371 = vadd.f32 0.0, %v370
    %372 = vmatprep.mubr.bf16.mxu0 0
    %373 = vmatmul.mubr.bf16.gmra.mrb[0].mxu0 %v158
    %v374 = vpop.f32.mrb[0].mxu0
    %v375 = vadd.f32 0.0, %v374
    %v376 = vpop.f32.mrb[0].mxu0
    %v377 = vadd.f32 0.0, %v376
    %v378 = vpop.f32.mrb[0].mxu0
    %v379 = vadd.f32 0.0, %v378
    %v380 = vpop.f32.mrb[0].mxu0
    %v381 = vadd.f32 0.0, %v380
    %382 = vmatprep.mubr.bf16.mxu0 0
    %383 = vmatmul.mubr.bf16.gmra.mrb[0].mxu0 %v159
    %v384 = vpop.f32.mrb[0].mxu0
    %v385 = vadd.f32 0.0, %v384
    %v386 = vpop.f32.mrb[0].mxu0
    %v387 = vadd.f32 0.0, %v386
    %v388 = vpop.f32.mrb[0].mxu0
    %v389 = vadd.f32 0.0, %v388
    %v390 = vpop.f32.mrb[0].mxu0
    %v391 = vadd.f32 0.0, %v390
    %392 = vdwg.mxu0
    %393 = vmatprep.subr.bf16.mxu0 0
    %394 = vmatpush1.bf16.msra.mxu0 %v274
    %395 = vmatprep.subr.bf16.mxu0 0
    %396 = vmatpush1.bf16.msra.mxu0 %v277
    %397 = vmatprep.subr.bf16.mxu0 0
    %398 = vmatpush1.bf16.msra.mxu0 %v280
    %399 = vmatprep.subr.bf16.mxu0 0
    %400 = vmatpush1.bf16.msra.mxu0 %v283
    %401 = vmatprep.subr.bf16.mxu0 0
    %402 = vmatpush1.bf16.msra.mxu0 %v286
    %403 = vmatprep.subr.bf16.mxu0 0
    %404 = vmatpush1.bf16.msra.mxu0 %v289
    %405 = vmatprep.subr.bf16.mxu0 0
    %406 = vmatpush1.bf16.msra.mxu0 %v292
    %407 = vmatprep.subr.bf16.mxu0 0
    %408 = vmatpush1.bf16.msra.mxu0 %v295
    %409 = vmatprep.subr.bf16.mxu0 0
    %410 = vmatpush1.bf16.msra.mxu0 0
    %411 = vmatprep.subr.bf16.mxu0 0
    %412 = vmatpush1.bf16.msra.mxu0 0
    %413 = vmatprep.subr.bf16.mxu0 0
    %414 = vmatpush1.bf16.msra.mxu0 0
    %415 = vmatprep.subr.bf16.mxu0 0
    %416 = vmatpush1.bf16.msra.mxu0 0
    %417 = vmatprep.subr.bf16.mxu0 0
    %418 = vmatpush1.bf16.msra.mxu0 0
    %419 = vmatprep.subr.bf16.mxu0 0
    %420 = vmatpush1.bf16.msra.mxu0 0
    %421 = vmatprep.subr.bf16.mxu0 0
    %422 = vmatpush1.bf16.msra.mxu0 0
    %423 = vmatprep.subr.bf16.mxu0 0
    %424 = vmatpush1.bf16.msra.mxu0 0
    %425 = vmatprep.mubr.bf16.mxu0 0
    %426 = vmatmul.mubr.bf16.gmra.mrb[0].mxu0 %v156
    %v427 = vpop.f32.mrb[0].mxu0
    %v428 = vadd.f32 0.0, %v427
    %v429 = vpop.f32.mrb[0].mxu0
    %v430 = vpop.f32.mrb[0].mxu0
    %v431 = vadd.f32 0.0, %v430
    %v432 = vpop.f32.mrb[0].mxu0
    %433 = vmatprep.mubr.bf16.mxu0 0
    %434 = vmatmul.mubr.bf16.gmra.mrb[0].mxu0 %v157
    %v435 = vpop.f32.mrb[0].mxu0
    %v436 = vadd.f32 0.0, %v435
    %v437 = vpop.f32.mrb[0].mxu0
    %v438 = vpop.f32.mrb[0].mxu0
    %v439 = vadd.f32 0.0, %v438
    %v440 = vpop.f32.mrb[0].mxu0
    %441 = vmatprep.mubr.bf16.mxu0 0
    %442 = vmatmul.mubr.bf16.gmra.mrb[0].mxu0 %v158
    %v443 = vpop.f32.mrb[0].mxu0
    %v444 = vadd.f32 0.0, %v443
    %v445 = vpop.f32.mrb[0].mxu0
    %v446 = vpop.f32.mrb[0].mxu0
    %v447 = vadd.f32 0.0, %v446
    %v448 = vpop.f32.mrb[0].mxu0
    %449 = vmatprep.mubr.bf16.mxu0 0
    %450 = vmatmul.mubr.bf16.gmra.mrb[0].mxu0 %v159
    %v451 = vpop.f32.mrb[0].mxu0
    %v452 = vadd.f32 0.0, %v451
    %v453 = vpop.f32.mrb[0].mxu0
    %v454 = vpop.f32.mrb[0].mxu0
    %v455 = vadd.f32 0.0, %v454
    %v456 = vpop.f32.mrb[0].mxu0
    %457 = vdwg.mxu0
    %v458 = vlaneseq
    %v459 = vshrl.u32 %v458, 7
    %v460 = vsub.s32 0, %v459
    %v461 = vrot.slane %v154, %v460
    %v462 = vadd.f32 %v355, %v461
    %v463 = vadd.f32 %v359, %v461
    %v464 = vadd.f32 %v365, %v461
    %v465 = vadd.f32 %v369, %v461
    %v466 = vadd.f32 %v375, %v461
    %v467 = vadd.f32 %v379, %v461
    %v468 = vadd.f32 %v385, %v461
    %v469 = vadd.f32 %v389, %v461
    %v470 = vlaneseq
    %v471 = vshrl.u32 %v470, 7
    %v472 = vsub.s32 1, %v471
    %v473 = vrot.slane %v154, %v472
    %v474 = vadd.f32 %v357, %v473
    %v475 = vadd.f32 %v361, %v473
    %v476 = vadd.f32 %v367, %v473
    %v477 = vadd.f32 %v371, %v473
    %v478 = vadd.f32 %v377, %v473
    %v479 = vadd.f32 %v381, %v473
    %v480 = vadd.f32 %v387, %v473
    %v481 = vadd.f32 %v391, %v473
    %v482 = vlaneseq
    %v483 = vshrl.u32 %v482, 7
    %v484 = vsub.s32 2, %v483
    %v485 = vrot.slane %v154, %v484
    %v486 = vadd.f32 %v428, %v485
    %v487 = vadd.f32 %v431, %v485
    %v488 = vadd.f32 %v436, %v485
    %v489 = vadd.f32 %v439, %v485
    %v490 = vadd.f32 %v444, %v485
    %v491 = vadd.f32 %v447, %v485
    %v492 = vadd.f32 %v452, %v485
    %v493 = vadd.f32 %v455, %v485
    %v494 = vpack.c.bf16 %v462, %v462
    %v495 = vpack.c.bf16 %v463, %v463
    %v496 = vpack.c.bf16 %v464, %v464
    %v497 = vpack.c.bf16 %v465, %v465
    %v498 = vpack.c.bf16 %v466, %v466
    %v499 = vpack.c.bf16 %v467, %v467
    %v500 = vpack.c.bf16 %v468, %v468
    %v501 = vpack.c.bf16 %v469, %v469
    %v502 = vpack.c.bf16 %v474, %v474
    %v503 = vpack.c.bf16 %v475, %v475
    %v504 = vpack.c.bf16 %v476, %v476
    %v505 = vpack.c.bf16 %v477, %v477
    %v506 = vpack.c.bf16 %v478, %v478
    %v507 = vpack.c.bf16 %v479, %v479
    %v508 = vpack.c.bf16 %v480, %v480
    %v509 = vpack.c.bf16 %v481, %v481
    %v510 = vpack.c.bf16 %v486, %v486
    %v511 = vpack.c.bf16 %v487, %v487
    %v512 = vpack.c.bf16 %v488, %v488
    %v513 = vpack.c.bf16 %v489, %v489
    %v514 = vpack.c.bf16 %v490, %v490
    %v515 = vpack.c.bf16 %v491, %v491
    %v516 = vpack.c.bf16 %v492, %v492
    %v517 = vpack.c.bf16 %v493, %v493
    %v518 = vld [vmem:[#allocation5] sm:$0x1]
    %v519 = vld [vmem:[#allocation5 + $0x1] sm:$0x1]
    %v520 = vld [vmem:[#allocation5 + $0x2] sm:$0x1]
    %v521 = vld [vmem:[#allocation5 + $0x3] sm:$0x1]
    %v522 = vld [vmem:[#allocation5 + $0x4] sm:$0x1]
    %v523 = vld [vmem:[#allocation5 + $0x5] sm:$0x1]
    %v524 = vld [vmem:[#allocation5 + $0x6] sm:$0x1]
    %v525 = vld [vmem:[#allocation5 + $0x7] sm:$0x1]
    %v534 = vlaneseq
    %v535 = vshrl.u32 %v534, 7
    %v536 = vsub.s32 0, %v535
    %v537 = vrot.slane %v518, %v536
    %v538 = vlaneseq
    %v539 = vshrl.u32 %v538, 7
    %v540 = vsub.s32 0, %v539
    %v541 = vrot.slane %v519, %v540
    %v542 = vlaneseq
    %v543 = vshrl.u32 %v542, 7
    %v544 = vsub.s32 0, %v543
    %v545 = vrot.slane %v520, %v544
    %v546 = vlaneseq
    %v547 = vshrl.u32 %v546, 7
    %v548 = vsub.s32 0, %v547
    %v549 = vrot.slane %v521, %v548
    %v550 = vlaneseq
    %v551 = vshrl.u32 %v550, 7
    %v552 = vsub.s32 0, %v551
    %v553 = vrot.slane %v522, %v552
    %v554 = vlaneseq
    %v555 = vshrl.u32 %v554, 7
    %v556 = vsub.s32 0, %v555
    %v557 = vrot.slane %v523, %v556
    %v558 = vlaneseq
    %v559 = vshrl.u32 %v558, 7
    %v560 = vsub.s32 0, %v559
    %v561 = vrot.slane %v524, %v560
    %v562 = vlaneseq
    %v563 = vshrl.u32 %v562, 7
    %v564 = vsub.s32 0, %v563
    %v565 = vrot.slane %v525, %v564
    %574 = vmatprep.subr.bf16.mxu0 0
    %575 = vmatpush1.bf16.xpose.msra.mxu0 %v502
    %576 = vmatprep.subr.bf16.mxu0 0
    %577 = vmatpush1.bf16.xpose.msra.mxu0 0
    %578 = vmatprep.subr.bf16.mxu0 0
    %579 = vmatpush1.bf16.xpose.msra.mxu0 0
    %580 = vmatprep.subr.bf16.mxu0 0
    %581 = vmatpush1.bf16.xpose.msra.mxu0 0
    %582 = vmatprep.subr.bf16.mxu0 0
    %583 = vmatpush1.bf16.xpose.msra.mxu0 0
    %584 = vmatprep.subr.bf16.mxu0 0
    %585 = vmatpush1.bf16.xpose.msra.mxu0 0
    %586 = vmatprep.subr.bf16.mxu0 0
    %587 = vmatpush1.bf16.xpose.msra.mxu0 0
    %588 = vmatprep.subr.bf16.mxu0 0
    %589 = vmatpush1.bf16.xpose.msra.mxu0 0
    %590 = vmatprep.subr.bf16.mxu0 0
    %591 = vmatpush1.bf16.xpose.msra.mxu0 0
    %592 = vmatprep.subr.bf16.mxu0 0
    %593 = vmatpush1.bf16.xpose.msra.mxu0 0
    %594 = vmatprep.subr.bf16.mxu0 0
    %595 = vmatpush1.bf16.xpose.msra.mxu0 0
    %596 = vmatprep.subr.bf16.mxu0 0
    %597 = vmatpush1.bf16.xpose.msra.mxu0 0
    %598 = vmatprep.subr.bf16.mxu0 0
    %599 = vmatpush1.bf16.xpose.msra.mxu0 0
    %600 = vmatprep.subr.bf16.mxu0 0
    %601 = vmatpush1.bf16.xpose.msra.mxu0 0
    %602 = vmatprep.subr.bf16.mxu0 0
    %603 = vmatpush1.bf16.xpose.msra.mxu0 0
    %604 = vmatprep.subr.bf16.mxu0 0
    %605 = vmatpush1.bf16.xpose.msra.mxu0 0
    %606 = vmatprep.mubr.bf16.mxu0 0
    %607 = vmatmul.mubr.bf16.gmra.mrb[0].mxu0 %v494
    %v608 = vpop.f32.mrb[0].mxu0
    %v609 = vadd.f32 %v537, %v608
    %v610 = vpop.f32.mrb[0].mxu0
    %v611 = vpop.f32.mrb[0].mxu0
    %v612 = vpop.f32.mrb[0].mxu0
    %613 = vdwg.mxu0
    %614 = vmatprep.subr.bf16.mxu0 0
    %615 = vmatpush1.bf16.xpose.msra.mxu0 %v503
    %616 = vmatprep.subr.bf16.mxu0 0
    %617 = vmatpush1.bf16.xpose.msra.mxu0 0
    %618 = vmatprep.subr.bf16.mxu0 0
    %619 = vmatpush1.bf16.xpose.msra.mxu0 0
    %620 = vmatprep.subr.bf16.mxu0 0
    %621 = vmatpush1.bf16.xpose.msra.mxu0 0
    %622 = vmatprep.subr.bf16.mxu0 0
    %623 = vmatpush1.bf16.xpose.msra.mxu0 0
    %624 = vmatprep.subr.bf16.mxu0 0
    %625 = vmatpush1.bf16.xpose.msra.mxu0 0
    %626 = vmatprep.subr.bf16.mxu0 0
    %627 = vmatpush1.bf16.xpose.msra.mxu0 0
    %628 = vmatprep.subr.bf16.mxu0 0
    %629 = vmatpush1.bf16.xpose.msra.mxu0 0
    %630 = vmatprep.subr.bf16.mxu0 0
    %631 = vmatpush1.bf16.xpose.msra.mxu0 0
    %632 = vmatprep.subr.bf16.mxu0 0
    %633 = vmatpush1.bf16.xpose.msra.mxu0 0
    %634 = vmatprep.subr.bf16.mxu0 0
    %635 = vmatpush1.bf16.xpose.msra.mxu0 0
    %636 = vmatprep.subr.bf16.mxu0 0
    %637 = vmatpush1.bf16.xpose.msra.mxu0 0
    %638 = vmatprep.subr.bf16.mxu0 0
    %639 = vmatpush1.bf16.xpose.msra.mxu0 0
    %640 = vmatprep.subr.bf16.mxu0 0
    %641 = vmatpush1.bf16.xpose.msra.mxu0 0
    %642 = vmatprep.subr.bf16.mxu0 0
    %643 = vmatpush1.bf16.xpose.msra.mxu0 0
    %644 = vmatprep.subr.bf16.mxu0 0
    %645 = vmatpush1.bf16.xpose.msra.mxu0 0
    %646 = vmatprep.mubr.bf16.mxu0 0
    %647 = vmatmul.mubr.bf16.gmra.mrb[0].mxu0 %v495
    %v648 = vpop.f32.mrb[0].mxu0
    %v649 = vadd.f32 %v541, %v648
    %v650 = vpop.f32.mrb[0].mxu0
    %v651 = vpop.f32.mrb[0].mxu0
    %v652 = vpop.f32.mrb[0].mxu0
    %653 = vdwg.mxu0
    %654 = vmatprep.subr.bf16.mxu0 0
    %655 = vmatpush1.bf16.xpose.msra.mxu0 %v504
    %656 = vmatprep.subr.bf16.mxu0 0
    %657 = vmatpush1.bf16.xpose.msra.mxu0 0
    %658 = vmatprep.subr.bf16.mxu0 0
    %659 = vmatpush1.bf16.xpose.msra.mxu0 0
    %660 = vmatprep.subr.bf16.mxu0 0
    %661 = vmatpush1.bf16.xpose.msra.mxu0 0
    %662 = vmatprep.subr.bf16.mxu0 0
    %663 = vmatpush1.bf16.xpose.msra.mxu0 0
    %664 = vmatprep.subr.bf16.mxu0 0
    %665 = vmatpush1.bf16.xpose.msra.mxu0 0
    %666 = vmatprep.subr.bf16.mxu0 0
    %667 = vmatpush1.bf16.xpose.msra.mxu0 0
    %668 = vmatprep.subr.bf16.mxu0 0
    %669 = vmatpush1.bf16.xpose.msra.mxu0 0
    %670 = vmatprep.subr.bf16.mxu0 0
    %671 = vmatpush1.bf16.xpose.msra.mxu0 0
    %672 = vmatprep.subr.bf16.mxu0 0
    %673 = vmatpush1.bf16.xpose.msra.mxu0 0
    %674 = vmatprep.subr.bf16.mxu0 0
    %675 = vmatpush1.bf16.xpose.msra.mxu0 0
    %676 = vmatprep.subr.bf16.mxu0 0
    %677 = vmatpush1.bf16.xpose.msra.mxu0 0
    %678 = vmatprep.subr.bf16.mxu0 0
    %679 = vmatpush1.bf16.xpose.msra.mxu0 0
    %680 = vmatprep.subr.bf16.mxu0 0
    %681 = vmatpush1.bf16.xpose.msra.mxu0 0
    %682 = vmatprep.subr.bf16.mxu0 0
    %683 = vmatpush1.bf16.xpose.msra.mxu0 0
    %684 = vmatprep.subr.bf16.mxu0 0
    %685 = vmatpush1.bf16.xpose.msra.mxu0 0
    %686 = vmatprep.mubr.bf16.mxu0 0
    %687 = vmatmul.mubr.bf16.gmra.mrb[0].mxu0 %v496
    %v688 = vpop.f32.mrb[0].mxu0
    %v689 = vadd.f32 %v545, %v688
    %v690 = vpop.f32.mrb[0].mxu0
    %v691 = vpop.f32.mrb[0].mxu0
    %v692 = vpop.f32.mrb[0].mxu0
    %693 = vdwg.mxu0
    %694 = vmatprep.subr.bf16.mxu0 0
    %695 = vmatpush1.bf16.xpose.msra.mxu0 %v505
    %696 = vmatprep.subr.bf16.mxu0 0
    %697 = vmatpush1.bf16.xpose.msra.mxu0 0
    %698 = vmatprep.subr.bf16.mxu0 0
    %699 = vmatpush1.bf16.xpose.msra.mxu0 0
    %700 = vmatprep.subr.bf16.mxu0 0
    %701 = vmatpush1.bf16.xpose.msra.mxu0 0
    %702 = vmatprep.subr.bf16.mxu0 0
    %703 = vmatpush1.bf16.xpose.msra.mxu0 0
    %704 = vmatprep.subr.bf16.mxu0 0
    %705 = vmatpush1.bf16.xpose.msra.mxu0 0
    %706 = vmatprep.subr.bf16.mxu0 0
    %707 = vmatpush1.bf16.xpose.msra.mxu0 0
    %708 = vmatprep.subr.bf16.mxu0 0
    %709 = vmatpush1.bf16.xpose.msra.mxu0 0
    %710 = vmatprep.subr.bf16.mxu0 0
    %711 = vmatpush1.bf16.xpose.msra.mxu0 0
    %712 = vmatprep.subr.bf16.mxu0 0
    %713 = vmatpush1.bf16.xpose.msra.mxu0 0
    %714 = vmatprep.subr.bf16.mxu0 0
    %715 = vmatpush1.bf16.xpose.msra.mxu0 0
    %716 = vmatprep.subr.bf16.mxu0 0
    %717 = vmatpush1.bf16.xpose.msra.mxu0 0
    %718 = vmatprep.subr.bf16.mxu0 0
    %719 = vmatpush1.bf16.xpose.msra.mxu0 0
    %720 = vmatprep.subr.bf16.mxu0 0
    %721 = vmatpush1.bf16.xpose.msra.mxu0 0
    %722 = vmatprep.subr.bf16.mxu0 0
    %723 = vmatpush1.bf16.xpose.msra.mxu0 0
    %724 = vmatprep.subr.bf16.mxu0 0
    %725 = vmatpush1.bf16.xpose.msra.mxu0 0
    %726 = vmatprep.mubr.bf16.mxu0 0
    %727 = vmatmul.mubr.bf16.gmra.mrb[0].mxu0 %v497
    %v728 = vpop.f32.mrb[0].mxu0
    %v729 = vadd.f32 %v549, %v728
    %v730 = vpop.f32.mrb[0].mxu0
    %v731 = vpop.f32.mrb[0].mxu0
    %v732 = vpop.f32.mrb[0].mxu0
    %733 = vdwg.mxu0
    %734 = vmatprep.subr.bf16.mxu0 0
    %735 = vmatpush1.bf16.xpose.msra.mxu0 %v506
    %736 = vmatprep.subr.bf16.mxu0 0
    %737 = vmatpush1.bf16.xpose.msra.mxu0 0
    %738 = vmatprep.subr.bf16.mxu0 0
    %739 = vmatpush1.bf16.xpose.msra.mxu0 0
    %740 = vmatprep.subr.bf16.mxu0 0
    %741 = vmatpush1.bf16.xpose.msra.mxu0 0
    %742 = vmatprep.subr.bf16.mxu0 0
    %743 = vmatpush1.bf16.xpose.msra.mxu0 0
    %744 = vmatprep.subr.bf16.mxu0 0
    %745 = vmatpush1.bf16.xpose.msra.mxu0 0
    %746 = vmatprep.subr.bf16.mxu0 0
    %747 = vmatpush1.bf16.xpose.msra.mxu0 0
    %748 = vmatprep.subr.bf16.mxu0 0
    %749 = vmatpush1.bf16.xpose.msra.mxu0 0
    %750 = vmatprep.subr.bf16.mxu0 0
    %751 = vmatpush1.bf16.xpose.msra.mxu0 0
    %752 = vmatprep.subr.bf16.mxu0 0
    %753 = vmatpush1.bf16.xpose.msra.mxu0 0
    %754 = vmatprep.subr.bf16.mxu0 0
    %755 = vmatpush1.bf16.xpose.msra.mxu0 0
    %756 = vmatprep.subr.bf16.mxu0 0
    %757 = vmatpush1.bf16.xpose.msra.mxu0 0
    %758 = vmatprep.subr.bf16.mxu0 0
    %759 = vmatpush1.bf16.xpose.msra.mxu0 0
    %760 = vmatprep.subr.bf16.mxu0 0
    %761 = vmatpush1.bf16.xpose.msra.mxu0 0
    %762 = vmatprep.subr.bf16.mxu0 0
    %763 = vmatpush1.bf16.xpose.msra.mxu0 0
    %764 = vmatprep.subr.bf16.mxu0 0
    %765 = vmatpush1.bf16.xpose.msra.mxu0 0
    %766 = vmatprep.mubr.bf16.mxu0 0
    %767 = vmatmul.mubr.bf16.gmra.mrb[0].mxu0 %v498
    %v768 = vpop.f32.mrb[0].mxu0
    %v769 = vadd.f32 %v553, %v768
    %v770 = vpop.f32.mrb[0].mxu0
    %v771 = vpop.f32.mrb[0].mxu0
    %v772 = vpop.f32.mrb[0].mxu0
    %773 = vdwg.mxu0
    %774 = vmatprep.subr.bf16.mxu0 0
    %775 = vmatpush1.bf16.xpose.msra.mxu0 %v507
    %776 = vmatprep.subr.bf16.mxu0 0
    %777 = vmatpush1.bf16.xpose.msra.mxu0 0
    %778 = vmatprep.subr.bf16.mxu0 0
    %779 = vmatpush1.bf16.xpose.msra.mxu0 0
    %780 = vmatprep.subr.bf16.mxu0 0
    %781 = vmatpush1.bf16.xpose.msra.mxu0 0
    %782 = vmatprep.subr.bf16.mxu0 0
    %783 = vmatpush1.bf16.xpose.msra.mxu0 0
    %784 = vmatprep.subr.bf16.mxu0 0
    %785 = vmatpush1.bf16.xpose.msra.mxu0 0
    %786 = vmatprep.subr.bf16.mxu0 0
    %787 = vmatpush1.bf16.xpose.msra.mxu0 0
    %788 = vmatprep.subr.bf16.mxu0 0
    %789 = vmatpush1.bf16.xpose.msra.mxu0 0
    %790 = vmatprep.subr.bf16.mxu0 0
    %791 = vmatpush1.bf16.xpose.msra.mxu0 0
    %792 = vmatprep.subr.bf16.mxu0 0
    %793 = vmatpush1.bf16.xpose.msra.mxu0 0
    %794 = vmatprep.subr.bf16.mxu0 0
    %795 = vmatpush1.bf16.xpose.msra.mxu0 0
    %796 = vmatprep.subr.bf16.mxu0 0
    %797 = vmatpush1.bf16.xpose.msra.mxu0 0
    %798 = vmatprep.subr.bf16.mxu0 0
    %799 = vmatpush1.bf16.xpose.msra.mxu0 0
    %800 = vmatprep.subr.bf16.mxu0 0
    %801 = vmatpush1.bf16.xpose.msra.mxu0 0
    %802 = vmatprep.subr.bf16.mxu0 0
    %803 = vmatpush1.bf16.xpose.msra.mxu0 0
    %804 = vmatprep.subr.bf16.mxu0 0
    %805 = vmatpush1.bf16.xpose.msra.mxu0 0
    %806 = vmatprep.mubr.bf16.mxu0 0
    %807 = vmatmul.mubr.bf16.gmra.mrb[0].mxu0 %v499
    %v808 = vpop.f32.mrb[0].mxu0
    %v809 = vadd.f32 %v557, %v808
    %v810 = vpop.f32.mrb[0].mxu0
    %v811 = vpop.f32.mrb[0].mxu0
    %v812 = vpop.f32.mrb[0].mxu0
    %813 = vdwg.mxu0
    %814 = vmatprep.subr.bf16.mxu0 0
    %815 = vmatpush1.bf16.xpose.msra.mxu0 %v508
    %816 = vmatprep.subr.bf16.mxu0 0
    %817 = vmatpush1.bf16.xpose.msra.mxu0 0
    %818 = vmatprep.subr.bf16.mxu0 0
    %819 = vmatpush1.bf16.xpose.msra.mxu0 0
    %820 = vmatprep.subr.bf16.mxu0 0
    %821 = vmatpush1.bf16.xpose.msra.mxu0 0
    %822 = vmatprep.subr.bf16.mxu0 0
    %823 = vmatpush1.bf16.xpose.msra.mxu0 0
    %824 = vmatprep.subr.bf16.mxu0 0
    %825 = vmatpush1.bf16.xpose.msra.mxu0 0
    %826 = vmatprep.subr.bf16.mxu0 0
    %827 = vmatpush1.bf16.xpose.msra.mxu0 0
    %828 = vmatprep.subr.bf16.mxu0 0
    %829 = vmatpush1.bf16.xpose.msra.mxu0 0
    %830 = vmatprep.subr.bf16.mxu0 0
    %831 = vmatpush1.bf16.xpose.msra.mxu0 0
    %832 = vmatprep.subr.bf16.mxu0 0
    %833 = vmatpush1.bf16.xpose.msra.mxu0 0
    %834 = vmatprep.subr.bf16.mxu0 0
    %835 = vmatpush1.bf16.xpose.msra.mxu0 0
    %836 = vmatprep.subr.bf16.mxu0 0
    %837 = vmatpush1.bf16.xpose.msra.mxu0 0
    %838 = vmatprep.subr.bf16.mxu0 0
    %839 = vmatpush1.bf16.xpose.msra.mxu0 0
    %840 = vmatprep.subr.bf16.mxu0 0
    %841 = vmatpush1.bf16.xpose.msra.mxu0 0
    %842 = vmatprep.subr.bf16.mxu0 0
    %843 = vmatpush1.bf16.xpose.msra.mxu0 0
    %844 = vmatprep.subr.bf16.mxu0 0
    %845 = vmatpush1.bf16.xpose.msra.mxu0 0
    %846 = vmatprep.mubr.bf16.mxu0 0
    %847 = vmatmul.mubr.bf16.gmra.mrb[0].mxu0 %v500
    %v848 = vpop.f32.mrb[0].mxu0
    %v849 = vadd.f32 %v561, %v848
    %v850 = vpop.f32.mrb[0].mxu0
    %v851 = vpop.f32.mrb[0].mxu0
    %v852 = vpop.f32.mrb[0].mxu0
    %853 = vdwg.mxu0
    %854 = vmatprep.subr.bf16.mxu0 0
    %855 = vmatpush1.bf16.xpose.msra.mxu0 %v509
    %856 = vmatprep.subr.bf16.mxu0 0
    %857 = vmatpush1.bf16.xpose.msra.mxu0 0
    %858 = vmatprep.subr.bf16.mxu0 0
    %859 = vmatpush1.bf16.xpose.msra.mxu0 0
    %860 = vmatprep.subr.bf16.mxu0 0
    %861 = vmatpush1.bf16.xpose.msra.mxu0 0
    %862 = vmatprep.subr.bf16.mxu0 0
    %863 = vmatpush1.bf16.xpose.msra.mxu0 0
    %864 = vmatprep.subr.bf16.mxu0 0
    %865 = vmatpush1.bf16.xpose.msra.mxu0 0
    %866 = vmatprep.subr.bf16.mxu0 0
    %867 = vmatpush1.bf16.xpose.msra.mxu0 0
    %868 = vmatprep.subr.bf16.mxu0 0
    %869 = vmatpush1.bf16.xpose.msra.mxu0 0
    %870 = vmatprep.subr.bf16.mxu0 0
    %871 = vmatpush1.bf16.xpose.msra.mxu0 0
    %872 = vmatprep.subr.bf16.mxu0 0
    %873 = vmatpush1.bf16.xpose.msra.mxu0 0
    %874 = vmatprep.subr.bf16.mxu0 0
    %875 = vmatpush1.bf16.xpose.msra.mxu0 0
    %876 = vmatprep.subr.bf16.mxu0 0
    %877 = vmatpush1.bf16.xpose.msra.mxu0 0
    %878 = vmatprep.subr.bf16.mxu0 0
    %879 = vmatpush1.bf16.xpose.msra.mxu0 0
    %880 = vmatprep.subr.bf16.mxu0 0
    %881 = vmatpush1.bf16.xpose.msra.mxu0 0
    %882 = vmatprep.subr.bf16.mxu0 0
    %883 = vmatpush1.bf16.xpose.msra.mxu0 0
    %884 = vmatprep.subr.bf16.mxu0 0
    %885 = vmatpush1.bf16.xpose.msra.mxu0 0
    %886 = vmatprep.mubr.bf16.mxu0 0
    %887 = vmatmul.mubr.bf16.gmra.mrb[0].mxu0 %v501
    %v888 = vpop.f32.mrb[0].mxu0
    %v889 = vadd.f32 %v565, %v888
    %v890 = vpop.f32.mrb[0].mxu0
    %v891 = vpop.f32.mrb[0].mxu0
    %v892 = vpop.f32.mrb[0].mxu0
    %893 = vdwg.mxu0
    %vm894 = vcmask 64512
    %v895 = vsel %vm894, %v609, -inf
    %896 = vmax.xlane.f32.xlu0 %v895
    %v897 = vpop.xlane.xlu0 %896
    %v898 = vsel %vm894, %v649, -inf
    %899 = vmax.xlane.f32.xlu0 %v898
    %v900 = vpop.xlane.xlu0 %899
    %v901 = vsel %vm894, %v689, -inf
    %902 = vmax.xlane.f32.xlu0 %v901
    %v903 = vpop.xlane.xlu0 %902
    %v904 = vsel %vm894, %v729, -inf
    %905 = vmax.xlane.f32.xlu0 %v904
    %v906 = vpop.xlane.xlu0 %905
    %v907 = vsel %vm894, %v769, -inf
    %908 = vmax.xlane.f32.xlu0 %v907
    %v909 = vpop.xlane.xlu0 %908
    %v910 = vsel %vm894, %v809, -inf
    %911 = vmax.xlane.f32.xlu0 %v910
    %v912 = vpop.xlane.xlu0 %911
    %v913 = vsel %vm894, %v849, -inf
    %914 = vmax.xlane.f32.xlu0 %v913
    %v915 = vpop.xlane.xlu0 %914
    %v916 = vsel %vm894, %v889, -inf
    %917 = vmax.xlane.f32.xlu0 %v916
    %v918 = vpop.xlane.xlu0 %917
    %v919 = vsub.f32 %v609, %v897
    %v920 = vsub.f32 %v649, %v900
    %v921 = vsub.f32 %v689, %v903
    %v922 = vsub.f32 %v729, %v906
    %v923 = vsub.f32 %v769, %v909
    %v924 = vsub.f32 %v809, %v912
    %v925 = vsub.f32 %v849, %v915
    %v926 = vsub.f32 %v889, %v918
    %v927 = vmul.f32 %v919, 1.442695
    %v928 = vpow.pop %v927
    %v929 = vmul.f32 %v920, 1.442695
    %v930 = vpow.pop %v929
    %v931 = vmul.f32 %v921, 1.442695
    %v932 = vpow.pop %v931
    %v933 = vmul.f32 %v922, 1.442695
    %v934 = vpow.pop %v933
    %v935 = vmul.f32 %v923, 1.442695
    %v936 = vpow.pop %v935
    %v937 = vmul.f32 %v924, 1.442695
    %v938 = vpow.pop %v937
    %v939 = vmul.f32 %v925, 1.442695
    %v940 = vpow.pop %v939
    %v941 = vmul.f32 %v926, 1.442695
    %v942 = vpow.pop %v941
    %v943 = vsel %vm894, %v928, 0.0
    %944 = vadd.xlane.f32.xlu0 %v943
    %v945 = vpop.xlane.xlu0 %944
    %v946 = vsel %vm894, %v930, 0.0
    %947 = vadd.xlane.f32.xlu0 %v946
    %v948 = vpop.xlane.xlu0 %947
    %v949 = vsel %vm894, %v932, 0.0
    %950 = vadd.xlane.f32.xlu0 %v949
    %v951 = vpop.xlane.xlu0 %950
    %v952 = vsel %vm894, %v934, 0.0
    %953 = vadd.xlane.f32.xlu0 %v952
    %v954 = vpop.xlane.xlu0 %953
    %v955 = vsel %vm894, %v936, 0.0
    %956 = vadd.xlane.f32.xlu0 %v955
    %v957 = vpop.xlane.xlu0 %956
    %v958 = vsel %vm894, %v938, 0.0
    %959 = vadd.xlane.f32.xlu0 %v958
    %v960 = vpop.xlane.xlu0 %959
    %v961 = vsel %vm894, %v940, 0.0
    %962 = vadd.xlane.f32.xlu0 %v961
    %v963 = vpop.xlane.xlu0 %962
    %v964 = vsel %vm894, %v942, 0.0
    %965 = vadd.xlane.f32.xlu0 %v964
    %v966 = vpop.xlane.xlu0 %965
    %v967 = vrcp.pop %v945
    %v968 = vrcp.pop %v948
    %v969 = vrcp.pop %v951
    %v970 = vrcp.pop %v954
    %v971 = vrcp.pop %v957
    %v972 = vrcp.pop %v960
    %v973 = vrcp.pop %v963
    %v974 = vrcp.pop %v966
    %v975 = vmul.f32 %v928, %v967
    %v976 = vmul.f32 %v930, %v968
    %v977 = vmul.f32 %v932, %v969
    %v978 = vmul.f32 %v934, %v970
    %v979 = vmul.f32 %v936, %v971
    %v980 = vmul.f32 %v938, %v972
    %v981 = vmul.f32 %v940, %v973
    %v982 = vmul.f32 %v942, %v974
    %v983 = vpack.c.bf16 %v975, %v975
    %v984 = vpack.c.bf16 %v976, %v976
    %v985 = vpack.c.bf16 %v977, %v977
    %v986 = vpack.c.bf16 %v978, %v978
    %v987 = vpack.c.bf16 %v979, %v979
    %v988 = vpack.c.bf16 %v980, %v980
    %v989 = vpack.c.bf16 %v981, %v981
    %v990 = vpack.c.bf16 %v982, %v982
    %v992 = vsel %vm894, %v983, 0
    %vm994 = vcmask 1043456
    %v996 = vsel %vm994, %v510, 0
    %998 = vmatprep.subr.bf16.mxu0 0
    %999 = vmatpush1.bf16.msra.mxu0 %v996
    %1000 = vmatprep.subr.bf16.mxu0 0
    %1001 = vmatpush1.bf16.msra.mxu0 0
    %1002 = vmatprep.subr.bf16.mxu0 0
    %1003 = vmatpush1.bf16.msra.mxu0 0
    %1004 = vmatprep.subr.bf16.mxu0 0
    %1005 = vmatpush1.bf16.msra.mxu0 0
    %1006 = vmatprep.subr.bf16.mxu0 0
    %1007 = vmatpush1.bf16.msra.mxu0 0
    %1008 = vmatprep.subr.bf16.mxu0 0
    %1009 = vmatpush1.bf16.msra.mxu0 0
    %1010 = vmatprep.subr.bf16.mxu0 0
    %1011 = vmatpush1.bf16.msra.mxu0 0
    %1012 = vmatprep.subr.bf16.mxu0 0
    %1013 = vmatpush1.bf16.msra.mxu0 0
    %1014 = vmatprep.subr.bf16.mxu0 0
    %1015 = vmatpush1.bf16.msra.mxu0 0
    %1016 = vmatprep.subr.bf16.mxu0 0
    %1017 = vmatpush1.bf16.msra.mxu0 0
    %1018 = vmatprep.subr.bf16.mxu0 0
    %1019 = vmatpush1.bf16.msra.mxu0 0
    %1020 = vmatprep.subr.bf16.mxu0 0
    %1021 = vmatpush1.bf16.msra.mxu0 0
    %1022 = vmatprep.subr.bf16.mxu0 0
    %1023 = vmatpush1.bf16.msra.mxu0 0
    %1024 = vmatprep.subr.bf16.mxu0 0
    %1025 = vmatpush1.bf16.msra.mxu0 0
    %1026 = vmatprep.subr.bf16.mxu0 0
    %1027 = vmatpush1.bf16.msra.mxu0 0
    %1028 = vmatprep.subr.bf16.mxu0 0
    %1029 = vmatpush1.bf16.msra.mxu0 0
    %1030 = vmatprep.mubr.bf16.mxu0 0
    %1031 = vmatmul.mubr.bf16.gmra.mrb[0].mxu0 %v992
    %v1032 = vpop.f32.mrb[0].mxu0
    %v1033 = vadd.f32 0.0, %v1032
    %v1034 = vpop.f32.mrb[0].mxu0
    %v1035 = vpop.f32.mrb[0].mxu0
    %v1036 = vpop.f32.mrb[0].mxu0
    %1037 = vdwg.mxu0
    %v1039 = vsel %vm894, %v984, 0
    %v1042 = vsel %vm994, %v511, 0
    %1044 = vmatprep.subr.bf16.mxu0 0
    %1045 = vmatpush1.bf16.msra.mxu0 %v1042
    %1046 = vmatprep.subr.bf16.mxu0 0
    %1047 = vmatpush1.bf16.msra.mxu0 0
    %1048 = vmatprep.subr.bf16.mxu0 0
    %1049 = vmatpush1.bf16.msra.mxu0 0
    %1050 = vmatprep.subr.bf16.mxu0 0
    %1051 = vmatpush1.bf16.msra.mxu0 0
    %1052 = vmatprep.subr.bf16.mxu0 0
    %1053 = vmatpush1.bf16.msra.mxu0 0
    %1054 = vmatprep.subr.bf16.mxu0 0
    %1055 = vmatpush1.bf16.msra.mxu0 0
    %1056 = vmatprep.subr.bf16.mxu0 0
    %1057 = vmatpush1.bf16.msra.mxu0 0
    %1058 = vmatprep.subr.bf16.mxu0 0
    %1059 = vmatpush1.bf16.msra.mxu0 0
    %1060 = vmatprep.subr.bf16.mxu0 0
    %1061 = vmatpush1.bf16.msra.mxu0 0
    %1062 = vmatprep.subr.bf16.mxu0 0
    %1063 = vmatpush1.bf16.msra.mxu0 0
    %1064 = vmatprep.subr.bf16.mxu0 0
    %1065 = vmatpush1.bf16.msra.mxu0 0
    %1066 = vmatprep.subr.bf16.mxu0 0
    %1067 = vmatpush1.bf16.msra.mxu0 0
    %1068 = vmatprep.subr.bf16.mxu0 0
    %1069 = vmatpush1.bf16.msra.mxu0 0
    %1070 = vmatprep.subr.bf16.mxu0 0
    %1071 = vmatpush1.bf16.msra.mxu0 0
    %1072 = vmatprep.subr.bf16.mxu0 0
    %1073 = vmatpush1.bf16.msra.mxu0 0
    %1074 = vmatprep.subr.bf16.mxu0 0
    %1075 = vmatpush1.bf16.msra.mxu0 0
    %1076 = vmatprep.mubr.bf16.mxu0 0
    %1077 = vmatmul.mubr.bf16.gmra.mrb[0].mxu0 %v1039
    %v1078 = vpop.f32.mrb[0].mxu0
    %v1079 = vadd.f32 0.0, %v1078
    %v1080 = vpop.f32.mrb[0].mxu0
    %v1081 = vpop.f32.mrb[0].mxu0
    %v1082 = vpop.f32.mrb[0].mxu0
    %1083 = vdwg.mxu0
    %v1085 = vsel %vm894, %v985, 0
    %v1088 = vsel %vm994, %v512, 0
    %1090 = vmatprep.subr.bf16.mxu0 0
    %1091 = vmatpush1.bf16.msra.mxu0 %v1088
    %1092 = vmatprep.subr.bf16.mxu0 0
    %1093 = vmatpush1.bf16.msra.mxu0 0
    %1094 = vmatprep.subr.bf16.mxu0 0
    %1095 = vmatpush1.bf16.msra.mxu0 0
    %1096 = vmatprep.subr.bf16.mxu0 0
    %1097 = vmatpush1.bf16.msra.mxu0 0
    %1098 = vmatprep.subr.bf16.mxu0 0
    %1099 = vmatpush1.bf16.msra.mxu0 0
    %1100 = vmatprep.subr.bf16.mxu0 0
    %1101 = vmatpush1.bf16.msra.mxu0 0
    %1102 = vmatprep.subr.bf16.mxu0 0
    %1103 = vmatpush1.bf16.msra.mxu0 0
    %1104 = vmatprep.subr.bf16.mxu0 0
    %1105 = vmatpush1.bf16.msra.mxu0 0
    %1106 = vmatprep.subr.bf16.mxu0 0
    %1107 = vmatpush1.bf16.msra.mxu0 0
    %1108 = vmatprep.subr.bf16.mxu0 0
    %1109 = vmatpush1.bf16.msra.mxu0 0
    %1110 = vmatprep.subr.bf16.mxu0 0
    %1111 = vmatpush1.bf16.msra.mxu0 0
    %1112 = vmatprep.subr.bf16.mxu0 0
    %1113 = vmatpush1.bf16.msra.mxu0 0
    %1114 = vmatprep.subr.bf16.mxu0 0
    %1115 = vmatpush1.bf16.msra.mxu0 0
    %1116 = vmatprep.subr.bf16.mxu0 0
    %1117 = vmatpush1.bf16.msra.mxu0 0
    %1118 = vmatprep.subr.bf16.mxu0 0
    %1119 = vmatpush1.bf16.msra.mxu0 0
    %1120 = vmatprep.subr.bf16.mxu0 0
    %1121 = vmatpush1.bf16.msra.mxu0 0
    %1122 = vmatprep.mubr.bf16.mxu0 0
    %1123 = vmatmul.mubr.bf16.gmra.mrb[0].mxu0 %v1085
    %v1124 = vpop.f32.mrb[0].mxu0
    %v1125 = vadd.f32 0.0, %v1124
    %v1126 = vpop.f32.mrb[0].mxu0
    %v1127 = vpop.f32.mrb[0].mxu0
    %v1128 = vpop.f32.mrb[0].mxu0
    %1129 = vdwg.mxu0
    %v1131 = vsel %vm894, %v986, 0
    %v1134 = vsel %vm994, %v513, 0
    %1136 = vmatprep.subr.bf16.mxu0 0
    %1137 = vmatpush1.bf16.msra.mxu0 %v1134
    %1138 = vmatprep.subr.bf16.mxu0 0
    %1139 = vmatpush1.bf16.msra.mxu0 0
    %1140 = vmatprep.subr.bf16.mxu0 0
    %1141 = vmatpush1.bf16.msra.mxu0 0
    %1142 = vmatprep.subr.bf16.mxu0 0
    %1143 = vmatpush1.bf16.msra.mxu0 0
    %1144 = vmatprep.subr.bf16.mxu0 0
    %1145 = vmatpush1.bf16.msra.mxu0 0
    %1146 = vmatprep.subr.bf16.mxu0 0
    %1147 = vmatpush1.bf16.msra.mxu0 0
    %1148 = vmatprep.subr.bf16.mxu0 0
    %1149 = vmatpush1.bf16.msra.mxu0 0
    %1150 = vmatprep.subr.bf16.mxu0 0
    %1151 = vmatpush1.bf16.msra.mxu0 0
    %1152 = vmatprep.subr.bf16.mxu0 0
    %1153 = vmatpush1.bf16.msra.mxu0 0
    %1154 = vmatprep.subr.bf16.mxu0 0
    %1155 = vmatpush1.bf16.msra.mxu0 0
    %1156 = vmatprep.subr.bf16.mxu0 0
    %1157 = vmatpush1.bf16.msra.mxu0 0
    %1158 = vmatprep.subr.bf16.mxu0 0
    %1159 = vmatpush1.bf16.msra.mxu0 0
    %1160 = vmatprep.subr.bf16.mxu0 0
    %1161 = vmatpush1.bf16.msra.mxu0 0
    %1162 = vmatprep.subr.bf16.mxu0 0
    %1163 = vmatpush1.bf16.msra.mxu0 0
    %1164 = vmatprep.subr.bf16.mxu0 0
    %1165 = vmatpush1.bf16.msra.mxu0 0
    %1166 = vmatprep.subr.bf16.mxu0 0
    %1167 = vmatpush1.bf16.msra.mxu0 0
    %1168 = vmatprep.mubr.bf16.mxu0 0
    %1169 = vmatmul.mubr.bf16.gmra.mrb[0].mxu0 %v1131
    %v1170 = vpop.f32.mrb[0].mxu0
    %v1171 = vadd.f32 0.0, %v1170
    %v1172 = vpop.f32.mrb[0].mxu0
    %v1173 = vpop.f32.mrb[0].mxu0
    %v1174 = vpop.f32.mrb[0].mxu0
    %1175 = vdwg.mxu0
    %v1177 = vsel %vm894, %v987, 0
    %v1180 = vsel %vm994, %v514, 0
    %1182 = vmatprep.subr.bf16.mxu0 0
    %1183 = vmatpush1.bf16.msra.mxu0 %v1180
    %1184 = vmatprep.subr.bf16.mxu0 0
    %1185 = vmatpush1.bf16.msra.mxu0 0
    %1186 = vmatprep.subr.bf16.mxu0 0
    %1187 = vmatpush1.bf16.msra.mxu0 0
    %1188 = vmatprep.subr.bf16.mxu0 0
    %1189 = vmatpush1.bf16.msra.mxu0 0
    %1190 = vmatprep.subr.bf16.mxu0 0
    %1191 = vmatpush1.bf16.msra.mxu0 0
    %1192 = vmatprep.subr.bf16.mxu0 0
    %1193 = vmatpush1.bf16.msra.mxu0 0
    %1194 = vmatprep.subr.bf16.mxu0 0
    %1195 = vmatpush1.bf16.msra.mxu0 0
    %1196 = vmatprep.subr.bf16.mxu0 0
    %1197 = vmatpush1.bf16.msra.mxu0 0
    %1198 = vmatprep.subr.bf16.mxu0 0
    %1199 = vmatpush1.bf16.msra.mxu0 0
    %1200 = vmatprep.subr.bf16.mxu0 0
    %1201 = vmatpush1.bf16.msra.mxu0 0
    %1202 = vmatprep.subr.bf16.mxu0 0
    %1203 = vmatpush1.bf16.msra.mxu0 0
    %1204 = vmatprep.subr.bf16.mxu0 0
    %1205 = vmatpush1.bf16.msra.mxu0 0
    %1206 = vmatprep.subr.bf16.mxu0 0
    %1207 = vmatpush1.bf16.msra.mxu0 0
    %1208 = vmatprep.subr.bf16.mxu0 0
    %1209 = vmatpush1.bf16.msra.mxu0 0
    %1210 = vmatprep.subr.bf16.mxu0 0
    %1211 = vmatpush1.bf16.msra.mxu0 0
    %1212 = vmatprep.subr.bf16.mxu0 0
    %1213 = vmatpush1.bf16.msra.mxu0 0
    %1214 = vmatprep.mubr.bf16.mxu0 0
    %1215 = vmatmul.mubr.bf16.gmra.mrb[0].mxu0 %v1177
    %v1216 = vpop.f32.mrb[0].mxu0
    %v1217 = vadd.f32 0.0, %v1216
    %v1218 = vpop.f32.mrb[0].mxu0
    %v1219 = vpop.f32.mrb[0].mxu0
    %v1220 = vpop.f32.mrb[0].mxu0
    %1221 = vdwg.mxu0
    %v1223 = vsel %vm894, %v988, 0
    %v1226 = vsel %vm994, %v515, 0
    %1228 = vmatprep.subr.bf16.mxu0 0
    %1229 = vmatpush1.bf16.msra.mxu0 %v1226
    %1230 = vmatprep.subr.bf16.mxu0 0
    %1231 = vmatpush1.bf16.msra.mxu0 0
    %1232 = vmatprep.subr.bf16.mxu0 0
    %1233 = vmatpush1.bf16.msra.mxu0 0
    %1234 = vmatprep.subr.bf16.mxu0 0
    %1235 = vmatpush1.bf16.msra.mxu0 0
    %1236 = vmatprep.subr.bf16.mxu0 0
    %1237 = vmatpush1.bf16.msra.mxu0 0
    %1238 = vmatprep.subr.bf16.mxu0 0
    %1239 = vmatpush1.bf16.msra.mxu0 0
    %1240 = vmatprep.subr.bf16.mxu0 0
    %1241 = vmatpush1.bf16.msra.mxu0 0
    %1242 = vmatprep.subr.bf16.mxu0 0
    %1243 = vmatpush1.bf16.msra.mxu0 0
    %1244 = vmatprep.subr.bf16.mxu0 0
    %1245 = vmatpush1.bf16.msra.mxu0 0
    %1246 = vmatprep.subr.bf16.mxu0 0
    %1247 = vmatpush1.bf16.msra.mxu0 0
    %1248 = vmatprep.subr.bf16.mxu0 0
    %1249 = vmatpush1.bf16.msra.mxu0 0
    %1250 = vmatprep.subr.bf16.mxu0 0
    %1251 = vmatpush1.bf16.msra.mxu0 0
    %1252 = vmatprep.subr.bf16.mxu0 0
    %1253 = vmatpush1.bf16.msra.mxu0 0
    %1254 = vmatprep.subr.bf16.mxu0 0
    %1255 = vmatpush1.bf16.msra.mxu0 0
    %1256 = vmatprep.subr.bf16.mxu0 0
    %1257 = vmatpush1.bf16.msra.mxu0 0
    %1258 = vmatprep.subr.bf16.mxu0 0
    %1259 = vmatpush1.bf16.msra.mxu0 0
    %1260 = vmatprep.mubr.bf16.mxu0 0
    %1261 = vmatmul.mubr.bf16.gmra.mrb[0].mxu0 %v1223
    %v1262 = vpop.f32.mrb[0].mxu0
    %v1263 = vadd.f32 0.0, %v1262
    %v1264 = vpop.f32.mrb[0].mxu0
    %v1265 = vpop.f32.mrb[0].mxu0
    %v1266 = vpop.f32.mrb[0].mxu0
    %1267 = vdwg.mxu0
    %v1269 = vsel %vm894, %v989, 0
    %v1272 = vsel %vm994, %v516, 0
    %1274 = vmatprep.subr.bf16.mxu0 0
    %1275 = vmatpush1.bf16.msra.mxu0 %v1272
    %1276 = vmatprep.subr.bf16.mxu0 0
    %1277 = vmatpush1.bf16.msra.mxu0 0
    %1278 = vmatprep.subr.bf16.mxu0 0
    %1279 = vmatpush1.bf16.msra.mxu0 0
    %1280 = vmatprep.subr.bf16.mxu0 0
    %1281 = vmatpush1.bf16.msra.mxu0 0
    %1282 = vmatprep.subr.bf16.mxu0 0
    %1283 = vmatpush1.bf16.msra.mxu0 0
    %1284 = vmatprep.subr.bf16.mxu0 0
    %1285 = vmatpush1.bf16.msra.mxu0 0
    %1286 = vmatprep.subr.bf16.mxu0 0
    %1287 = vmatpush1.bf16.msra.mxu0 0
    %1288 = vmatprep.subr.bf16.mxu0 0
    %1289 = vmatpush1.bf16.msra.mxu0 0
    %1290 = vmatprep.subr.bf16.mxu0 0
    %1291 = vmatpush1.bf16.msra.mxu0 0
    %1292 = vmatprep.subr.bf16.mxu0 0
    %1293 = vmatpush1.bf16.msra.mxu0 0
    %1294 = vmatprep.subr.bf16.mxu0 0
    %1295 = vmatpush1.bf16.msra.mxu0 0
    %1296 = vmatprep.subr.bf16.mxu0 0
    %1297 = vmatpush1.bf16.msra.mxu0 0
    %1298 = vmatprep.subr.bf16.mxu0 0
    %1299 = vmatpush1.bf16.msra.mxu0 0
    %1300 = vmatprep.subr.bf16.mxu0 0
    %1301 = vmatpush1.bf16.msra.mxu0 0
    %1302 = vmatprep.subr.bf16.mxu0 0
    %1303 = vmatpush1.bf16.msra.mxu0 0
    %1304 = vmatprep.subr.bf16.mxu0 0
    %1305 = vmatpush1.bf16.msra.mxu0 0
    %1306 = vmatprep.mubr.bf16.mxu0 0
    %1307 = vmatmul.mubr.bf16.gmra.mrb[0].mxu0 %v1269
    %v1308 = vpop.f32.mrb[0].mxu0
    %v1309 = vadd.f32 0.0, %v1308
    %v1310 = vpop.f32.mrb[0].mxu0
    %v1311 = vpop.f32.mrb[0].mxu0
    %v1312 = vpop.f32.mrb[0].mxu0
    %1313 = vdwg.mxu0
    %v1315 = vsel %vm894, %v990, 0
    %v1318 = vsel %vm994, %v517, 0
    %1320 = vmatprep.subr.bf16.mxu0 0
    %1321 = vmatpush1.bf16.msra.mxu0 %v1318
    %1322 = vmatprep.subr.bf16.mxu0 0
    %1323 = vmatpush1.bf16.msra.mxu0 0
    %1324 = vmatprep.subr.bf16.mxu0 0
    %1325 = vmatpush1.bf16.msra.mxu0 0
    %1326 = vmatprep.subr.bf16.mxu0 0
    %1327 = vmatpush1.bf16.msra.mxu0 0
    %1328 = vmatprep.subr.bf16.mxu0 0
    %1329 = vmatpush1.bf16.msra.mxu0 0
    %1330 = vmatprep.subr.bf16.mxu0 0
    %1331 = vmatpush1.bf16.msra.mxu0 0
    %1332 = vmatprep.subr.bf16.mxu0 0
    %1333 = vmatpush1.bf16.msra.mxu0 0
    %1334 = vmatprep.subr.bf16.mxu0 0
    %1335 = vmatpush1.bf16.msra.mxu0 0
    %1336 = vmatprep.subr.bf16.mxu0 0
    %1337 = vmatpush1.bf16.msra.mxu0 0
    %1338 = vmatprep.subr.bf16.mxu0 0
    %1339 = vmatpush1.bf16.msra.mxu0 0
    %1340 = vmatprep.subr.bf16.mxu0 0
    %1341 = vmatpush1.bf16.msra.mxu0 0
    %1342 = vmatprep.subr.bf16.mxu0 0
    %1343 = vmatpush1.bf16.msra.mxu0 0
    %1344 = vmatprep.subr.bf16.mxu0 0
    %1345 = vmatpush1.bf16.msra.mxu0 0
    %1346 = vmatprep.subr.bf16.mxu0 0
    %1347 = vmatpush1.bf16.msra.mxu0 0
    %1348 = vmatprep.subr.bf16.mxu0 0
    %1349 = vmatpush1.bf16.msra.mxu0 0
    %1350 = vmatprep.subr.bf16.mxu0 0
    %1351 = vmatpush1.bf16.msra.mxu0 0
    %1352 = vmatprep.mubr.bf16.mxu0 0
    %1353 = vmatmul.mubr.bf16.gmra.mrb[0].mxu0 %v1315
    %v1354 = vpop.f32.mrb[0].mxu0
    %v1355 = vadd.f32 0.0, %v1354
    %v1356 = vpop.f32.mrb[0].mxu0
    %v1357 = vpop.f32.mrb[0].mxu0
    %v1358 = vpop.f32.mrb[0].mxu0
    %1359 = vdwg.mxu0
    %v1360 = vpack.c.bf16 %v1079, %v1033
    %v1361 = vpack.c.bf16 %v1171, %v1125
    %v1362 = vpack.c.bf16 %v1263, %v1217
    %v1363 = vpack.c.bf16 %v1355, %v1309
    %v1364 = vld [vmem:[#allocation8] sm:$0xf]
    %v1365 = vld [vmem:[#allocation8 + $0x4] sm:$0xf]
    %v1366 = vld [vmem:[#allocation8 + $0x8] sm:$0xf]
    %v1367 = vld [vmem:[#allocation8 + $0xc] sm:$0xf]
    %v1368 = vld [vmem:[#allocation8 + $0x10] sm:$0xf]
    %v1369 = vld [vmem:[#allocation8 + $0x14] sm:$0xf]
    %v1370 = vld [vmem:[#allocation8 + $0x18] sm:$0xf]
    %v1371 = vld [vmem:[#allocation8 + $0x1c] sm:$0xf]
    %v1372 = vld [vmem:[#allocation8 + $0x20] sm:$0xf]
    %v1373 = vld [vmem:[#allocation8 + $0x24] sm:$0xf]
    %v1374 = vld [vmem:[#allocation8 + $0x28] sm:$0xf]
    %v1375 = vld [vmem:[#allocation8 + $0x2c] sm:$0xf]
    %v1376 = vld [vmem:[#allocation8 + $0x30] sm:$0xf]
    %v1377 = vld [vmem:[#allocation8 + $0x34] sm:$0xf]
    %v1378 = vld [vmem:[#allocation8 + $0x38] sm:$0xf]
    %v1379 = vld [vmem:[#allocation8 + $0x3c] sm:$0xf]
    %v1380 = vlaneseq
    %v1381 = vshrl.u32 %v1380, 7
    %v1382 = vsub.s32 3, %v1381
    %v1383 = vrot.slane %v154, %v1382
    %v1400 = vunpack.c.l.b16 %v1364
    %v1401 = vunpack.c.l.b16 %v1365
    %v1402 = vunpack.c.l.b16 %v1366
    %v1403 = vunpack.c.l.b16 %v1367
    %v1404 = vunpack.c.l.b16 %v1368
    %v1405 = vunpack.c.l.b16 %v1369
    %v1406 = vunpack.c.l.b16 %v1370
    %v1407 = vunpack.c.l.b16 %v1371
    %v1408 = vunpack.c.l.b16 %v1372
    %v1409 = vunpack.c.l.b16 %v1373
    %v1410 = vunpack.c.l.b16 %v1374
    %v1411 = vunpack.c.l.b16 %v1375
    %v1412 = vunpack.c.l.b16 %v1376
    %v1413 = vunpack.c.l.b16 %v1377
    %v1414 = vunpack.c.l.b16 %v1378
    %v1415 = vunpack.c.l.b16 %v1379
    %v1416 = vpack.c.b16 %v1401, %v1400
    %v1417 = vpack.c.b16 %v1403, %v1402
    %v1418 = vpack.c.b16 %v1405, %v1404
    %v1419 = vpack.c.b16 %v1407, %v1406
    %v1420 = vpack.c.b16 %v1409, %v1408
    %v1421 = vpack.c.b16 %v1411, %v1410
    %v1422 = vpack.c.b16 %v1413, %v1412
    %v1423 = vpack.c.b16 %v1415, %v1414
    %1432 = vmatprep.subr.bf16.mxu0 0
    %1433 = vmatpush1.bf16.msra.mxu0 %v1416
    %1434 = vmatprep.subr.bf16.mxu0 0
    %1435 = vmatpush1.bf16.msra.mxu0 %v1417
    %1436 = vmatprep.subr.bf16.mxu0 0
    %1437 = vmatpush1.bf16.msra.mxu0 %v1418
    %1438 = vmatprep.subr.bf16.mxu0 0
    %1439 = vmatpush1.bf16.msra.mxu0 %v1419
    %1440 = vmatprep.subr.bf16.mxu0 0
    %1441 = vmatpush1.bf16.msra.mxu0 %v1420
    %1442 = vmatprep.subr.bf16.mxu0 0
    %1443 = vmatpush1.bf16.msra.mxu0 %v1421
    %1444 = vmatprep.subr.bf16.mxu0 0
    %1445 = vmatpush1.bf16.msra.mxu0 %v1422
    %1446 = vmatprep.subr.bf16.mxu0 0
    %1447 = vmatpush1.bf16.msra.mxu0 %v1423
    %1448 = vmatprep.subr.bf16.mxu0 0
    %1449 = vmatpush1.bf16.msra.mxu0 0
    %1450 = vmatprep.subr.bf16.mxu0 0
    %1451 = vmatpush1.bf16.msra.mxu0 0
    %1452 = vmatprep.subr.bf16.mxu0 0
    %1453 = vmatpush1.bf16.msra.mxu0 0
    %1454 = vmatprep.subr.bf16.mxu0 0
    %1455 = vmatpush1.bf16.msra.mxu0 0
    %1456 = vmatprep.subr.bf16.mxu0 0
    %1457 = vmatpush1.bf16.msra.mxu0 0
    %1458 = vmatprep.subr.bf16.mxu0 0
    %1459 = vmatpush1.bf16.msra.mxu0 0
    %1460 = vmatprep.subr.bf16.mxu0 0
    %1461 = vmatpush1.bf16.msra.mxu0 0
    %1462 = vmatprep.subr.bf16.mxu0 0
    %1463 = vmatpush1.bf16.msra.mxu0 0
    %1464 = vmatprep.mubr.bf16.mxu0 0
    %1465 = vmatmul.mubr.bf16.gmra.mrb[0].mxu0 %v1360
    %v1466 = vpop.f32.mrb[0].mxu0
    %v1467 = vadd.f32 %v1383, %v1466
    %v1468 = vpop.f32.mrb[0].mxu0
    %v1469 = vpop.f32.mrb[0].mxu0
    %v1470 = vadd.f32 %v1383, %v1469
    %v1471 = vpop.f32.mrb[0].mxu0
    %1472 = vmatprep.mubr.bf16.mxu0 0
    %1473 = vmatmul.mubr.bf16.gmra.mrb[0].mxu0 %v1361
    %v1474 = vpop.f32.mrb[0].mxu0
    %v1475 = vadd.f32 %v1383, %v1474
    %v1476 = vpop.f32.mrb[0].mxu0
    %v1477 = vpop.f32.mrb[0].mxu0
    %v1478 = vadd.f32 %v1383, %v1477
    %v1479 = vpop.f32.mrb[0].mxu0
    %1480 = vmatprep.mubr.bf16.mxu0 0
    %1481 = vmatmul.mubr.bf16.gmra.mrb[0].mxu0 %v1362
    %v1482 = vpop.f32.mrb[0].mxu0
    %v1483 = vadd.f32 %v1383, %v1482
    %v1484 = vpop.f32.mrb[0].mxu0
    %v1485 = vpop.f32.mrb[0].mxu0
    %v1486 = vadd.f32 %v1383, %v1485
    %v1487 = vpop.f32.mrb[0].mxu0
    %1488 = vmatprep.mubr.bf16.mxu0 0
    %1489 = vmatmul.mubr.bf16.gmra.mrb[0].mxu0 %v1363
    %v1490 = vpop.f32.mrb[0].mxu0
    %v1491 = vadd.f32 %v1383, %v1490
    %v1492 = vpop.f32.mrb[0].mxu0
    %v1493 = vpop.f32.mrb[0].mxu0
    %v1494 = vadd.f32 %v1383, %v1493
    %v1495 = vpop.f32.mrb[0].mxu0
    %1496 = vdwg.mxu0
    %v1497 = vadd.f32 %v146, %v1467
    %v1498 = vadd.f32 %v147, %v1470
    %v1499 = vadd.f32 %v148, %v1475
    %v1500 = vadd.f32 %v149, %v1478
    %v1501 = vadd.f32 %v150, %v1483
    %v1502 = vadd.f32 %v151, %v1486
    %v1503 = vadd.f32 %v152, %v1491
    %v1504 = vadd.f32 %v153, %v1494
    %1505 = vadd.xlane.f32.xlu0 %v1497
    %v1506 = vpop.xlane.xlu0 %1505
    %1507 = vadd.xlane.f32.xlu0 %v1498
    %v1508 = vpop.xlane.xlu0 %1507
    %1509 = vadd.xlane.f32.xlu0 %v1499
    %v1510 = vpop.xlane.xlu0 %1509
    %1511 = vadd.xlane.f32.xlu0 %v1500
    %v1512 = vpop.xlane.xlu0 %1511
    %1513 = vadd.xlane.f32.xlu0 %v1501
    %v1514 = vpop.xlane.xlu0 %1513
    %1515 = vadd.xlane.f32.xlu0 %v1502
    %v1516 = vpop.xlane.xlu0 %1515
    %1517 = vadd.xlane.f32.xlu0 %v1503
    %v1518 = vpop.xlane.xlu0 %1517
    %1519 = vadd.xlane.f32.xlu0 %v1504
    %v1520 = vpop.xlane.xlu0 %1519
    %v1521 = vrcp.pop 128.0
    %v1522 = vmul.f32 %v1506, %v1521
    %v1523 = vmul.f32 %v1508, %v1521
    %v1524 = vmul.f32 %v1510, %v1521
    %v1525 = vmul.f32 %v1512, %v1521
    %v1526 = vmul.f32 %v1514, %v1521
    %v1527 = vmul.f32 %v1516, %v1521
    %v1528 = vmul.f32 %v1518, %v1521
    %v1529 = vmul.f32 %v1520, %v1521
    %v1530 = vsub.f32 %v1497, %v1522
    %v1531 = vsub.f32 %v1498, %v1523
    %v1532 = vsub.f32 %v1499, %v1524
    %v1533 = vsub.f32 %v1500, %v1525
    %v1534 = vsub.f32 %v1501, %v1526
    %v1535 = vsub.f32 %v1502, %v1527
    %v1536 = vsub.f32 %v1503, %v1528
    %v1537 = vsub.f32 %v1504, %v1529
    %v1538 = vmul.f32 %v1530, %v1530
    %v1539 = vmul.f32 %v1531, %v1531
    %v1540 = vmul.f32 %v1532, %v1532
    %v1541 = vmul.f32 %v1533, %v1533
    %v1542 = vmul.f32 %v1534, %v1534
    %v1543 = vmul.f32 %v1535, %v1535
    %v1544 = vmul.f32 %v1536, %v1536
    %v1545 = vmul.f32 %v1537, %v1537
    %1546 = vadd.xlane.f32.xlu0 %v1538
    %v1547 = vpop.xlane.xlu0 %1546
    %1548 = vadd.xlane.f32.xlu0 %v1539
    %v1549 = vpop.xlane.xlu0 %1548
    %1550 = vadd.xlane.f32.xlu0 %v1540
    %v1551 = vpop.xlane.xlu0 %1550
    %1552 = vadd.xlane.f32.xlu0 %v1541
    %v1553 = vpop.xlane.xlu0 %1552
    %1554 = vadd.xlane.f32.xlu0 %v1542
    %v1555 = vpop.xlane.xlu0 %1554
    %1556 = vadd.xlane.f32.xlu0 %v1543
    %v1557 = vpop.xlane.xlu0 %1556
    %1558 = vadd.xlane.f32.xlu0 %v1544
    %v1559 = vpop.xlane.xlu0 %1558
    %1560 = vadd.xlane.f32.xlu0 %v1545
    %v1561 = vpop.xlane.xlu0 %1560
    %v1562 = vmul.f32 %v1547, %v1521
    %v1563 = vmul.f32 %v1549, %v1521
    %v1564 = vmul.f32 %v1551, %v1521
    %v1565 = vmul.f32 %v1553, %v1521
    %v1566 = vmul.f32 %v1555, %v1521
    %v1567 = vmul.f32 %v1557, %v1521
    %v1568 = vmul.f32 %v1559, %v1521
    %v1569 = vmul.f32 %v1561, %v1521
    %v1570 = vadd.f32 %v1562, 1e-12
    %v1571 = vadd.f32 %v1563, 1e-12
    %v1572 = vadd.f32 %v1564, 1e-12
    %v1573 = vadd.f32 %v1565, 1e-12
    %v1574 = vadd.f32 %v1566, 1e-12
    %v1575 = vadd.f32 %v1567, 1e-12
    %v1576 = vadd.f32 %v1568, 1e-12
    %v1577 = vadd.f32 %v1569, 1e-12
    %v1578 = vrsqrt.pop %v1570
    %v1579 = vrsqrt.pop %v1571
    %v1580 = vrsqrt.pop %v1572
    %v1581 = vrsqrt.pop %v1573
    %v1582 = vrsqrt.pop %v1574
    %v1583 = vrsqrt.pop %v1575
    %v1584 = vrsqrt.pop %v1576
    %v1585 = vrsqrt.pop %v1577
    %v1586 = vmul.f32 %v1530, %v1578
    %v1587 = vmul.f32 %v1531, %v1579
    %v1588 = vmul.f32 %v1532, %v1580
    %v1589 = vmul.f32 %v1533, %v1581
    %v1590 = vmul.f32 %v1534, %v1582
    %v1591 = vmul.f32 %v1535, %v1583
    %v1592 = vmul.f32 %v1536, %v1584
    %v1593 = vmul.f32 %v1537, %v1585
    %v1594 = vlaneseq
    %v1595 = vshrl.u32 %v1594, 7
    %v1596 = vsub.s32 5, %v1595
    %v1597 = vrot.slane %v154, %v1596
    %v1598 = vmul.f32 %v1586, %v1597
    %v1599 = vmul.f32 %v1587, %v1597
    %v1600 = vmul.f32 %v1588, %v1597
    %v1601 = vmul.f32 %v1589, %v1597
    %v1602 = vmul.f32 %v1590, %v1597
    %v1603 = vmul.f32 %v1591, %v1597
    %v1604 = vmul.f32 %v1592, %v1597
    %v1605 = vmul.f32 %v1593, %v1597
    %v1606 = vlaneseq
    %v1607 = vshrl.u32 %v1606, 7
    %v1608 = vsub.s32 6, %v1607
    %v1609 = vrot.slane %v154, %v1608
    %v1610 = vadd.f32 %v1598, %v1609
    %v1611 = vadd.f32 %v1599, %v1609
    %v1612 = vadd.f32 %v1600, %v1609
    %v1613 = vadd.f32 %v1601, %v1609
    %v1614 = vadd.f32 %v1602, %v1609
    %v1615 = vadd.f32 %v1603, %v1609
    %v1616 = vadd.f32 %v1604, %v1609
    %v1617 = vadd.f32 %v1605, %v1609
    %v1618 = vpack.c.bf16 %v1611, %v1610
    %v1619 = vpack.c.bf16 %v1613, %v1612
    %v1620 = vpack.c.bf16 %v1615, %v1614
    %v1621 = vpack.c.bf16 %v1617, %v1616
    %v1622 = vld [vmem:[#allocation10] sm:$0xff]
    %v1623 = vld [vmem:[#allocation10 + $0x8] sm:$0xff]
    %v1624 = vld [vmem:[#allocation10 + $0x10] sm:$0xff]
    %v1625 = vld [vmem:[#allocation10 + $0x18] sm:$0xff]
    %v1626 = vld [vmem:[#allocation10 + $0x20] sm:$0xff]
    %v1627 = vld [vmem:[#allocation10 + $0x28] sm:$0xff]
    %v1628 = vld [vmem:[#allocation10 + $0x30] sm:$0xff]
    %v1629 = vld [vmem:[#allocation10 + $0x38] sm:$0xff]
    %v1630 = vld [vmem:[#allocation10 + $0x40] sm:$0xff]
    %v1631 = vld [vmem:[#allocation10 + $0x48] sm:$0xff]
    %v1632 = vld [vmem:[#allocation10 + $0x50] sm:$0xff]
    %v1633 = vld [vmem:[#allocation10 + $0x58] sm:$0xff]
    %v1634 = vld [vmem:[#allocation10 + $0x60] sm:$0xff]
    %v1635 = vld [vmem:[#allocation10 + $0x68] sm:$0xff]
    %v1636 = vld [vmem:[#allocation10 + $0x70] sm:$0xff]
    %v1637 = vld [vmem:[#allocation10 + $0x78] sm:$0xff]
    %v1638 = vld [vmem:[#allocation10 + $0x80] sm:$0xff]
    %v1639 = vld [vmem:[#allocation10 + $0x88] sm:$0xff]
    %v1640 = vld [vmem:[#allocation10 + $0x90] sm:$0xff]
    %v1641 = vld [vmem:[#allocation10 + $0x98] sm:$0xff]
    %v1642 = vld [vmem:[#allocation10 + $0xa0] sm:$0xff]
    %v1643 = vld [vmem:[#allocation10 + $0xa8] sm:$0xff]
    %v1644 = vld [vmem:[#allocation10 + $0xb0] sm:$0xff]
    %v1645 = vld [vmem:[#allocation10 + $0xb8] sm:$0xff]
    %v1646 = vld [vmem:[#allocation10 + $0xc0] sm:$0xff]
    %v1647 = vld [vmem:[#allocation10 + $0xc8] sm:$0xff]
    %v1648 = vld [vmem:[#allocation10 + $0xd0] sm:$0xff]
    %v1649 = vld [vmem:[#allocation10 + $0xd8] sm:$0xff]
    %v1650 = vld [vmem:[#allocation10 + $0xe0] sm:$0xff]
    %v1651 = vld [vmem:[#allocation10 + $0xe8] sm:$0xff]
    %v1652 = vld [vmem:[#allocation10 + $0xf0] sm:$0xff]
    %v1653 = vld [vmem:[#allocation10 + $0xf8] sm:$0xff]
    %v1654 = vld [vmem:[%s5] sm:$0xf]
    %v1656 = vlaneseq
    %v1657 = vshrl.u32 %v1656, 7
    %v1658 = vsub.s32 0, %v1657
    %v1659 = vrot.slane %v1654, %v1658
    %v1660 = vlaneseq
    %v1661 = vshrl.u32 %v1660, 7
    %v1662 = vsub.s32 1, %v1661
    %v1663 = vrot.slane %v1654, %v1662
    %v1664 = vlaneseq
    %v1665 = vshrl.u32 %v1664, 7
    %v1666 = vsub.s32 2, %v1665
    %v1667 = vrot.slane %v1654, %v1666
    %v1668 = vlaneseq
    %v1669 = vshrl.u32 %v1668, 7
    %v1670 = vsub.s32 3, %v1669
    %v1671 = vrot.slane %v1654, %v1670
    %v1708 = vunpack.c.l.b16 %v1622
    %v1709 = vunpack.c.h.b16 %v1622
    %v1710 = vunpack.c.l.b16 %v1623
    %v1711 = vunpack.c.h.b16 %v1623
    %v1712 = vunpack.c.l.b16 %v1624
    %v1713 = vunpack.c.h.b16 %v1624
    %v1714 = vunpack.c.l.b16 %v1625
    %v1715 = vunpack.c.h.b16 %v1625
    %v1716 = vunpack.c.l.b16 %v1626
    %v1717 = vunpack.c.h.b16 %v1626
    %v1718 = vunpack.c.l.b16 %v1627
    %v1719 = vunpack.c.h.b16 %v1627
    %v1720 = vunpack.c.l.b16 %v1628
    %v1721 = vunpack.c.h.b16 %v1628
    %v1722 = vunpack.c.l.b16 %v1629
    %v1723 = vunpack.c.h.b16 %v1629
    %v1724 = vunpack.c.l.b16 %v1630
    %v1725 = vunpack.c.h.b16 %v1630
    %v1726 = vunpack.c.l.b16 %v1631
    %v1727 = vunpack.c.h.b16 %v1631
    %v1728 = vunpack.c.l.b16 %v1632
    %v1729 = vunpack.c.h.b16 %v1632
    %v1730 = vunpack.c.l.b16 %v1633
    %v1731 = vunpack.c.h.b16 %v1633
    %v1732 = vunpack.c.l.b16 %v1634
    %v1733 = vunpack.c.h.b16 %v1634
    %v1734 = vunpack.c.l.b16 %v1635
    %v1735 = vunpack.c.h.b16 %v1635
    %v1736 = vunpack.c.l.b16 %v1636
    %v1737 = vunpack.c.h.b16 %v1636
    %v1738 = vunpack.c.l.b16 %v1637
    %v1739 = vunpack.c.h.b16 %v1637
    %v1740 = vunpack.c.l.b16 %v1638
    %v1741 = vunpack.c.h.b16 %v1638
    %v1742 = vunpack.c.l.b16 %v1639
    %v1743 = vunpack.c.h.b16 %v1639
    %v1744 = vunpack.c.l.b16 %v1640
    %v1745 = vunpack.c.h.b16 %v1640
    %v1746 = vunpack.c.l.b16 %v1641
    %v1747 = vunpack.c.h.b16 %v1641
    %v1748 = vunpack.c.l.b16 %v1642
    %v1749 = vunpack.c.h.b16 %v1642
    %v1750 = vunpack.c.l.b16 %v1643
    %v1751 = vunpack.c.h.b16 %v1643
    %v1752 = vunpack.c.l.b16 %v1644
    %v1753 = vunpack.c.h.b16 %v1644
    %v1754 = vunpack.c.l.b16 %v1645
    %v1755 = vunpack.c.h.b16 %v1645
    %v1756 = vunpack.c.l.b16 %v1646
    %v1757 = vunpack.c.h.b16 %v1646
    %v1758 = vunpack.c.l.b16 %v1647
    %v1759 = vunpack.c.h.b16 %v1647
    %v1760 = vunpack.c.l.b16 %v1648
    %v1761 = vunpack.c.h.b16 %v1648
    %v1762 = vunpack.c.l.b16 %v1649
    %v1763 = vunpack.c.h.b16 %v1649
    %v1764 = vunpack.c.l.b16 %v1650
    %v1765 = vunpack.c.h.b16 %v1650
    %v1766 = vunpack.c.l.b16 %v1651
    %v1767 = vunpack.c.h.b16 %v1651
    %v1768 = vunpack.c.l.b16 %v1652
    %v1769 = vunpack.c.h.b16 %v1652
    %v1770 = vunpack.c.l.b16 %v1653
    %v1771 = vunpack.c.h.b16 %v1653
    %v1772 = vpack.c.b16 %v1712, %v1708
    %v1773 = vpack.c.b16 %v1713, %v1709
    %v1774 = vpack.c.b16 %v1714, %v1710
    %v1775 = vpack.c.b16 %v1715, %v1711
    %v1776 = vpack.c.b16 %v1720, %v1716
    %v1777 = vpack.c.b16 %v1721, %v1717
    %v1778 = vpack.c.b16 %v1722, %v1718
    %v1779 = vpack.c.b16 %v1723, %v1719
    %v1780 = vpack.c.b16 %v1728, %v1724
    %v1781 = vpack.c.b16 %v1729, %v1725
    %v1782 = vpack.c.b16 %v1730, %v1726
    %v1783 = vpack.c.b16 %v1731, %v1727
    %v1784 = vpack.c.b16 %v1736, %v1732
    %v1785 = vpack.c.b16 %v1737, %v1733
    %v1786 = vpack.c.b16 %v1738, %v1734
    %v1787 = vpack.c.b16 %v1739, %v1735
    %v1788 = vpack.c.b16 %v1744, %v1740
    %v1789 = vpack.c.b16 %v1745, %v1741
    %v1790 = vpack.c.b16 %v1746, %v1742
    %v1791 = vpack.c.b16 %v1747, %v1743
    %v1792 = vpack.c.b16 %v1752, %v1748
    %v1793 = vpack.c.b16 %v1753, %v1749
    %v1794 = vpack.c.b16 %v1754, %v1750
    %v1795 = vpack.c.b16 %v1755, %v1751
    %v1796 = vpack.c.b16 %v1760, %v1756
    %v1797 = vpack.c.b16 %v1761, %v1757
    %v1798 = vpack.c.b16 %v1762, %v1758
    %v1799 = vpack.c.b16 %v1763, %v1759
    %v1800 = vpack.c.b16 %v1768, %v1764
    %v1801 = vpack.c.b16 %v1769, %v1765
    %v1802 = vpack.c.b16 %v1770, %v1766
    %v1803 = vpack.c.b16 %v1771, %v1767
    %1836 = vmatprep.subr.bf16.mxu0 %v1773
    %1837 = vmatpush1.bf16.msra.mxu0 %v1772
    %1838 = vmatprep.subr.bf16.mxu0 %v1777
    %1839 = vmatpush1.bf16.msra.mxu0 %v1776
    %1840 = vmatprep.subr.bf16.mxu0 %v1781
    %1841 = vmatpush1.bf16.msra.mxu0 %v1780
    %1842 = vmatprep.subr.bf16.mxu0 %v1785
    %1843 = vmatpush1.bf16.msra.mxu0 %v1784
    %1844 = vmatprep.subr.bf16.mxu0 %v1789
    %1845 = vmatpush1.bf16.msra.mxu0 %v1788
    %1846 = vmatprep.subr.bf16.mxu0 %v1793
    %1847 = vmatpush1.bf16.msra.mxu0 %v1792
    %1848 = vmatprep.subr.bf16.mxu0 %v1797
    %1849 = vmatpush1.bf16.msra.mxu0 %v1796
    %1850 = vmatprep.subr.bf16.mxu0 %v1801
    %1851 = vmatpush1.bf16.msra.mxu0 %v1800
    %1852 = vmatprep.subr.bf16.mxu0 0
    %1853 = vmatpush1.bf16.msra.mxu0 0
    %1854 = vmatprep.subr.bf16.mxu0 0
    %1855 = vmatpush1.bf16.msra.mxu0 0
    %1856 = vmatprep.subr.bf16.mxu0 0
    %1857 = vmatpush1.bf16.msra.mxu0 0
    %1858 = vmatprep.subr.bf16.mxu0 0
    %1859 = vmatpush1.bf16.msra.mxu0 0
    %1860 = vmatprep.subr.bf16.mxu0 0
    %1861 = vmatpush1.bf16.msra.mxu0 0
    %1862 = vmatprep.subr.bf16.mxu0 0
    %1863 = vmatpush1.bf16.msra.mxu0 0
    %1864 = vmatprep.subr.bf16.mxu0 0
    %1865 = vmatpush1.bf16.msra.mxu0 0
    %1866 = vmatprep.subr.bf16.mxu0 0
    %1867 = vmatpush1.bf16.msra.mxu0 0
    %1868 = vmatprep.mubr.bf16.mxu0 0
    %1869 = vmatmul.mubr.bf16.gmra.mrb[0].mxu0 %v1618
    %v1870 = vpop.f32.mrb[0].mxu0
    %v1871 = vadd.f32 %v1659, %v1870
    %v1872 = vpop.f32.mrb[0].mxu0
    %v1873 = vadd.f32 %v1663, %v1872
    %v1874 = vpop.f32.mrb[0].mxu0
    %v1875 = vadd.f32 %v1659, %v1874
    %v1876 = vpop.f32.mrb[0].mxu0
    %v1877 = vadd.f32 %v1663, %v1876
    %1878 = vmatprep.mubr.bf16.mxu0 0
    %1879 = vmatmul.mubr.bf16.gmra.mrb[0].mxu0 %v1619
    %v1880 = vpop.f32.mrb[0].mxu0
    %v1881 = vadd.f32 %v1659, %v1880
    %v1882 = vpop.f32.mrb[0].mxu0
    %v1883 = vadd.f32 %v1663, %v1882
    %v1884 = vpop.f32.mrb[0].mxu0
    %v1885 = vadd.f32 %v1659, %v1884
    %v1886 = vpop.f32.mrb[0].mxu0
    %v1887 = vadd.f32 %v1663, %v1886
    %1888 = vmatprep.mubr.bf16.mxu0 0
    %1889 = vmatmul.mubr.bf16.gmra.mrb[0].mxu0 %v1620
    %v1890 = vpop.f32.mrb[0].mxu0
    %v1891 = vadd.f32 %v1659, %v1890
    %v1892 = vpop.f32.mrb[0].mxu0
    %v1893 = vadd.f32 %v1663, %v1892
    %v1894 = vpop.f32.mrb[0].mxu0
    %v1895 = vadd.f32 %v1659, %v1894
    %v1896 = vpop.f32.mrb[0].mxu0
    %v1897 = vadd.f32 %v1663, %v1896
    %1898 = vmatprep.mubr.bf16.mxu0 0
    %1899 = vmatmul.mubr.bf16.gmra.mrb[0].mxu0 %v1621
    %v1900 = vpop.f32.mrb[0].mxu0
    %v1901 = vadd.f32 %v1659, %v1900
    %v1902 = vpop.f32.mrb[0].mxu0
    %v1903 = vadd.f32 %v1663, %v1902
    %v1904 = vpop.f32.mrb[0].mxu0
    %v1905 = vadd.f32 %v1659, %v1904
    %v1906 = vpop.f32.mrb[0].mxu0
    %v1907 = vadd.f32 %v1663, %v1906
    %1908 = vdwg.mxu0
    %1909 = vmatprep.subr.bf16.mxu0 %v1775
    %1910 = vmatpush1.bf16.msra.mxu0 %v1774
    %1911 = vmatprep.subr.bf16.mxu0 %v1779
    %1912 = vmatpush1.bf16.msra.mxu0 %v1778
    %1913 = vmatprep.subr.bf16.mxu0 %v1783
    %1914 = vmatpush1.bf16.msra.mxu0 %v1782
    %1915 = vmatprep.subr.bf16.mxu0 %v1787
    %1916 = vmatpush1.bf16.msra.mxu0 %v1786
    %1917 = vmatprep.subr.bf16.mxu0 %v1791
    %1918 = vmatpush1.bf16.msra.mxu0 %v1790
    %1919 = vmatprep.subr.bf16.mxu0 %v1795
    %1920 = vmatpush1.bf16.msra.mxu0 %v1794
    %1921 = vmatprep.subr.bf16.mxu0 %v1799
    %1922 = vmatpush1.bf16.msra.mxu0 %v1798
    %1923 = vmatprep.subr.bf16.mxu0 %v1803
    %1924 = vmatpush1.bf16.msra.mxu0 %v1802
    %1925 = vmatprep.subr.bf16.mxu0 0
    %1926 = vmatpush1.bf16.msra.mxu0 0
    %1927 = vmatprep.subr.bf16.mxu0 0
    %1928 = vmatpush1.bf16.msra.mxu0 0
    %1929 = vmatprep.subr.bf16.mxu0 0
    %1930 = vmatpush1.bf16.msra.mxu0 0
    %1931 = vmatprep.subr.bf16.mxu0 0
    %1932 = vmatpush1.bf16.msra.mxu0 0
    %1933 = vmatprep.subr.bf16.mxu0 0
    %1934 = vmatpush1.bf16.msra.mxu0 0
    %1935 = vmatprep.subr.bf16.mxu0 0
    %1936 = vmatpush1.bf16.msra.mxu0 0
    %1937 = vmatprep.subr.bf16.mxu0 0
    %1938 = vmatpush1.bf16.msra.mxu0 0
    %1939 = vmatprep.subr.bf16.mxu0 0
    %1940 = vmatpush1.bf16.msra.mxu0 0
    %1941 = vmatprep.mubr.bf16.mxu0 0
    %1942 = vmatmul.mubr.bf16.gmra.mrb[0].mxu0 %v1618
    %v1943 = vpop.f32.mrb[0].mxu0
    %v1944 = vadd.f32 %v1667, %v1943
    %v1945 = vpop.f32.mrb[0].mxu0
    %v1946 = vadd.f32 %v1671, %v1945
    %v1947 = vpop.f32.mrb[0].mxu0
    %v1948 = vadd.f32 %v1667, %v1947
    %v1949 = vpop.f32.mrb[0].mxu0
    %v1950 = vadd.f32 %v1671, %v1949
    %1951 = vmatprep.mubr.bf16.mxu0 0
    %1952 = vmatmul.mubr.bf16.gmra.mrb[0].mxu0 %v1619
    %v1953 = vpop.f32.mrb[0].mxu0
    %v1954 = vadd.f32 %v1667, %v1953
    %v1955 = vpop.f32.mrb[0].mxu0
    %v1956 = vadd.f32 %v1671, %v1955
    %v1957 = vpop.f32.mrb[0].mxu0
    %v1958 = vadd.f32 %v1667, %v1957
    %v1959 = vpop.f32.mrb[0].mxu0
    %v1960 = vadd.f32 %v1671, %v1959
    %1961 = vmatprep.mubr.bf16.mxu0 0
    %1962 = vmatmul.mubr.bf16.gmra.mrb[0].mxu0 %v1620
    %v1963 = vpop.f32.mrb[0].mxu0
    %v1964 = vadd.f32 %v1667, %v1963
    %v1965 = vpop.f32.mrb[0].mxu0
    %v1966 = vadd.f32 %v1671, %v1965
    %v1967 = vpop.f32.mrb[0].mxu0
    %v1968 = vadd.f32 %v1667, %v1967
    %v1969 = vpop.f32.mrb[0].mxu0
    %v1970 = vadd.f32 %v1671, %v1969
    %1971 = vmatprep.mubr.bf16.mxu0 0
    %1972 = vmatmul.mubr.bf16.gmra.mrb[0].mxu0 %v1621
    %v1973 = vpop.f32.mrb[0].mxu0
    %v1974 = vadd.f32 %v1667, %v1973
    %v1975 = vpop.f32.mrb[0].mxu0
    %v1976 = vadd.f32 %v1671, %v1975
    %v1977 = vpop.f32.mrb[0].mxu0
    %v1978 = vadd.f32 %v1667, %v1977
    %v1979 = vpop.f32.mrb[0].mxu0
    %v1980 = vadd.f32 %v1671, %v1979
    %1981 = vdwg.mxu0
    %v1982 = vmax.f32 %v1871, 0.0
    %v1983 = vmax.f32 %v1873, 0.0
    %v1984 = vmax.f32 %v1944, 0.0
    %v1985 = vmax.f32 %v1946, 0.0
    %v1986 = vmax.f32 %v1875, 0.0
    %v1987 = vmax.f32 %v1877, 0.0
    %v1988 = vmax.f32 %v1948, 0.0
    %v1989 = vmax.f32 %v1950, 0.0
    %v1990 = vmax.f32 %v1881, 0.0
    %v1991 = vmax.f32 %v1883, 0.0
    %v1992 = vmax.f32 %v1954, 0.0
    %v1993 = vmax.f32 %v1956, 0.0
    %v1994 = vmax.f32 %v1885, 0.0
    %v1995 = vmax.f32 %v1887, 0.0
    %v1996 = vmax.f32 %v1958, 0.0
    %v1997 = vmax.f32 %v1960, 0.0
    %v1998 = vmax.f32 %v1891, 0.0
    %v1999 = vmax.f32 %v1893, 0.0
    %v2000 = vmax.f32 %v1964, 0.0
    %v2001 = vmax.f32 %v1966, 0.0
    %v2002 = vmax.f32 %v1895, 0.0
    %v2003 = vmax.f32 %v1897, 0.0
    %v2004 = vmax.f32 %v1968, 0.0
    %v2005 = vmax.f32 %v1970, 0.0
    %v2006 = vmax.f32 %v1901, 0.0
    %v2007 = vmax.f32 %v1903, 0.0
    %v2008 = vmax.f32 %v1974, 0.0
    %v2009 = vmax.f32 %v1976, 0.0
    %v2010 = vmax.f32 %v1905, 0.0
    %v2011 = vmax.f32 %v1907, 0.0
    %v2012 = vmax.f32 %v1978, 0.0
    %v2013 = vmax.f32 %v1980, 0.0
    %v2014 = vpack.c.bf16 %v1986, %v1982
    %v2015 = vpack.c.bf16 %v1987, %v1983
    %v2016 = vpack.c.bf16 %v1988, %v1984
    %v2017 = vpack.c.bf16 %v1989, %v1985
    %v2018 = vpack.c.bf16 %v1994, %v1990
    %v2019 = vpack.c.bf16 %v1995, %v1991
    %v2020 = vpack.c.bf16 %v1996, %v1992
    %v2021 = vpack.c.bf16 %v1997, %v1993
    %v2022 = vpack.c.bf16 %v2002, %v1998
    %v2023 = vpack.c.bf16 %v2003, %v1999
    %v2024 = vpack.c.bf16 %v2004, %v2000
    %v2025 = vpack.c.bf16 %v2005, %v2001
    %v2026 = vpack.c.bf16 %v2010, %v2006
    %v2027 = vpack.c.bf16 %v2011, %v2007
    %v2028 = vpack.c.bf16 %v2012, %v2008
    %v2029 = vpack.c.bf16 %v2013, %v2009
    %v2030 = vld [vmem:[#allocation11] sm:$0xf]
    %v2031 = vld [vmem:[#allocation11 + $0x4] sm:$0xf]
    %v2032 = vld [vmem:[#allocation11 + $0x8] sm:$0xf]
    %v2033 = vld [vmem:[#allocation11 + $0xc] sm:$0xf]
    %v2034 = vld [vmem:[#allocation11 + $0x10] sm:$0xf]
    %v2035 = vld [vmem:[#allocation11 + $0x14] sm:$0xf]
    %v2036 = vld [vmem:[#allocation11 + $0x18] sm:$0xf]
    %v2037 = vld [vmem:[#allocation11 + $0x1c] sm:$0xf]
    %v2038 = vld [vmem:[#allocation11 + $0x20] sm:$0xf]
    %v2039 = vld [vmem:[#allocation11 + $0x24] sm:$0xf]
    %v2040 = vld [vmem:[#allocation11 + $0x28] sm:$0xf]
    %v2041 = vld [vmem:[#allocation11 + $0x2c] sm:$0xf]
    %v2042 = vld [vmem:[#allocation11 + $0x30] sm:$0xf]
    %v2043 = vld [vmem:[#allocation11 + $0x34] sm:$0xf]
    %v2044 = vld [vmem:[#allocation11 + $0x38] sm:$0xf]
    %v2045 = vld [vmem:[#allocation11 + $0x3c] sm:$0xf]
    %v2046 = vld [vmem:[#allocation11 + $0x40] sm:$0xf]
    %v2047 = vld [vmem:[#allocation11 + $0x44] sm:$0xf]
    %v2048 = vld [vmem:[#allocation11 + $0x48] sm:$0xf]
    %v2049 = vld [vmem:[#allocation11 + $0x4c] sm:$0xf]
    %v2050 = vld [vmem:[#allocation11 + $0x50] sm:$0xf]
    %v2051 = vld [vmem:[#allocation11 + $0x54] sm:$0xf]
    %v2052 = vld [vmem:[#allocation11 + $0x58] sm:$0xf]
    %v2053 = vld [vmem:[#allocation11 + $0x5c] sm:$0xf]
    %v2054 = vld [vmem:[#allocation11 + $0x60] sm:$0xf]
    %v2055 = vld [vmem:[#allocation11 + $0x64] sm:$0xf]
    %v2056 = vld [vmem:[#allocation11 + $0x68] sm:$0xf]
    %v2057 = vld [vmem:[#allocation11 + $0x6c] sm:$0xf]
    %v2058 = vld [vmem:[#allocation11 + $0x70] sm:$0xf]
    %v2059 = vld [vmem:[#allocation11 + $0x74] sm:$0xf]
    %v2060 = vld [vmem:[#allocation11 + $0x78] sm:$0xf]
    %v2061 = vld [vmem:[#allocation11 + $0x7c] sm:$0xf]
    %v2062 = vld [vmem:[#allocation11 + $0x80] sm:$0xf]
    %v2063 = vld [vmem:[#allocation11 + $0x84] sm:$0xf]
    %v2064 = vld [vmem:[#allocation11 + $0x88] sm:$0xf]
    %v2065 = vld [vmem:[#allocation11 + $0x8c] sm:$0xf]
    %v2066 = vld [vmem:[#allocation11 + $0x90] sm:$0xf]
    %v2067 = vld [vmem:[#allocation11 + $0x94] sm:$0xf]
    %v2068 = vld [vmem:[#allocation11 + $0x98] sm:$0xf]
    %v2069 = vld [vmem:[#allocation11 + $0x9c] sm:$0xf]
    %v2070 = vld [vmem:[#allocation11 + $0xa0] sm:$0xf]
    %v2071 = vld [vmem:[#allocation11 + $0xa4] sm:$0xf]
    %v2072 = vld [vmem:[#allocation11 + $0xa8] sm:$0xf]
    %v2073 = vld [vmem:[#allocation11 + $0xac] sm:$0xf]
    %v2074 = vld [vmem:[#allocation11 + $0xb0] sm:$0xf]
    %v2075 = vld [vmem:[#allocation11 + $0xb4] sm:$0xf]
    %v2076 = vld [vmem:[#allocation11 + $0xb8] sm:$0xf]
    %v2077 = vld [vmem:[#allocation11 + $0xbc] sm:$0xf]
    %v2078 = vld [vmem:[#allocation11 + $0xc0] sm:$0xf]
    %v2079 = vld [vmem:[#allocation11 + $0xc4] sm:$0xf]
    %v2080 = vld [vmem:[#allocation11 + $0xc8] sm:$0xf]
    %v2081 = vld [vmem:[#allocation11 + $0xcc] sm:$0xf]
    %v2082 = vld [vmem:[#allocation11 + $0xd0] sm:$0xf]
    %v2083 = vld [vmem:[#allocation11 + $0xd4] sm:$0xf]
    %v2084 = vld [vmem:[#allocation11 + $0xd8] sm:$0xf]
    %v2085 = vld [vmem:[#allocation11 + $0xdc] sm:$0xf]
    %v2086 = vld [vmem:[#allocation11 + $0xe0] sm:$0xf]
    %v2087 = vld [vmem:[#allocation11 + $0xe4] sm:$0xf]
    %v2088 = vld [vmem:[#allocation11 + $0xe8] sm:$0xf]
    %v2089 = vld [vmem:[#allocation11 + $0xec] sm:$0xf]
    %v2090 = vld [vmem:[#allocation11 + $0xf0] sm:$0xf]
    %v2091 = vld [vmem:[#allocation11 + $0xf4] sm:$0xf]
    %v2092 = vld [vmem:[#allocation11 + $0xf8] sm:$0xf]
    %v2093 = vld [vmem:[#allocation11 + $0xfc] sm:$0xf]
    %v2094 = vlaneseq
    %v2095 = vshrl.u32 %v2094, 7
    %v2096 = vsub.s32 4, %v2095
    %v2097 = vrot.slane %v154, %v2096
    %v2162 = vunpack.c.l.b16 %v2030
    %v2163 = vunpack.c.l.b16 %v2031
    %v2164 = vunpack.c.l.b16 %v2032
    %v2165 = vunpack.c.l.b16 %v2033
    %v2166 = vunpack.c.l.b16 %v2034
    %v2167 = vunpack.c.l.b16 %v2035
    %v2168 = vunpack.c.l.b16 %v2036
    %v2169 = vunpack.c.l.b16 %v2037
    %v2170 = vunpack.c.l.b16 %v2038
    %v2171 = vunpack.c.l.b16 %v2039
    %v2172 = vunpack.c.l.b16 %v2040
    %v2173 = vunpack.c.l.b16 %v2041
    %v2174 = vunpack.c.l.b16 %v2042
    %v2175 = vunpack.c.l.b16 %v2043
    %v2176 = vunpack.c.l.b16 %v2044
    %v2177 = vunpack.c.l.b16 %v2045
    %v2178 = vunpack.c.l.b16 %v2046
    %v2179 = vunpack.c.l.b16 %v2047
    %v2180 = vunpack.c.l.b16 %v2048
    %v2181 = vunpack.c.l.b16 %v2049
    %v2182 = vunpack.c.l.b16 %v2050
    %v2183 = vunpack.c.l.b16 %v2051
    %v2184 = vunpack.c.l.b16 %v2052
    %v2185 = vunpack.c.l.b16 %v2053
    %v2186 = vunpack.c.l.b16 %v2054
    %v2187 = vunpack.c.l.b16 %v2055
    %v2188 = vunpack.c.l.b16 %v2056
    %v2189 = vunpack.c.l.b16 %v2057
    %v2190 = vunpack.c.l.b16 %v2058
    %v2191 = vunpack.c.l.b16 %v2059
    %v2192 = vunpack.c.l.b16 %v2060
    %v2193 = vunpack.c.l.b16 %v2061
    %v2194 = vunpack.c.l.b16 %v2062
    %v2195 = vunpack.c.l.b16 %v2063
    %v2196 = vunpack.c.l.b16 %v2064
    %v2197 = vunpack.c.l.b16 %v2065
    %v2198 = vunpack.c.l.b16 %v2066
    %v2199 = vunpack.c.l.b16 %v2067
    %v2200 = vunpack.c.l.b16 %v2068
    %v2201 = vunpack.c.l.b16 %v2069
    %v2202 = vunpack.c.l.b16 %v2070
    %v2203 = vunpack.c.l.b16 %v2071
    %v2204 = vunpack.c.l.b16 %v2072
    %v2205 = vunpack.c.l.b16 %v2073
    %v2206 = vunpack.c.l.b16 %v2074
    %v2207 = vunpack.c.l.b16 %v2075
    %v2208 = vunpack.c.l.b16 %v2076
    %v2209 = vunpack.c.l.b16 %v2077
    %v2210 = vunpack.c.l.b16 %v2078
    %v2211 = vunpack.c.l.b16 %v2079
    %v2212 = vunpack.c.l.b16 %v2080
    %v2213 = vunpack.c.l.b16 %v2081
    %v2214 = vunpack.c.l.b16 %v2082
    %v2215 = vunpack.c.l.b16 %v2083
    %v2216 = vunpack.c.l.b16 %v2084
    %v2217 = vunpack.c.l.b16 %v2085
    %v2218 = vunpack.c.l.b16 %v2086
    %v2219 = vunpack.c.l.b16 %v2087
    %v2220 = vunpack.c.l.b16 %v2088
    %v2221 = vunpack.c.l.b16 %v2089
    %v2222 = vunpack.c.l.b16 %v2090
    %v2223 = vunpack.c.l.b16 %v2091
    %v2224 = vunpack.c.l.b16 %v2092
    %v2225 = vunpack.c.l.b16 %v2093
    %v2226 = vpack.c.b16 %v2163, %v2162
    %v2227 = vpack.c.b16 %v2165, %v2164
    %v2228 = vpack.c.b16 %v2167, %v2166
    %v2229 = vpack.c.b16 %v2169, %v2168
    %v2230 = vpack.c.b16 %v2171, %v2170
    %v2231 = vpack.c.b16 %v2173, %v2172
    %v2232 = vpack.c.b16 %v2175, %v2174
    %v2233 = vpack.c.b16 %v2177, %v2176
    %v2234 = vpack.c.b16 %v2179, %v2178
    %v2235 = vpack.c.b16 %v2181, %v2180
    %v2236 = vpack.c.b16 %v2183, %v2182
    %v2237 = vpack.c.b16 %v2185, %v2184
    %v2238 = vpack.c.b16 %v2187, %v2186
    %v2239 = vpack.c.b16 %v2189, %v2188
    %v2240 = vpack.c.b16 %v2191, %v2190
    %v2241 = vpack.c.b16 %v2193, %v2192
    %v2242 = vpack.c.b16 %v2195, %v2194
    %v2243 = vpack.c.b16 %v2197, %v2196
    %v2244 = vpack.c.b16 %v2199, %v2198
    %v2245 = vpack.c.b16 %v2201, %v2200
    %v2246 = vpack.c.b16 %v2203, %v2202
    %v2247 = vpack.c.b16 %v2205, %v2204
    %v2248 = vpack.c.b16 %v2207, %v2206
    %v2249 = vpack.c.b16 %v2209, %v2208
    %v2250 = vpack.c.b16 %v2211, %v2210
    %v2251 = vpack.c.b16 %v2213, %v2212
    %v2252 = vpack.c.b16 %v2215, %v2214
    %v2253 = vpack.c.b16 %v2217, %v2216
    %v2254 = vpack.c.b16 %v2219, %v2218
    %v2255 = vpack.c.b16 %v2221, %v2220
    %v2256 = vpack.c.b16 %v2223, %v2222
    %v2257 = vpack.c.b16 %v2225, %v2224
    %2290 = vmatprep.subr.bf16.mxu0 0
    %2291 = vmatpush1.bf16.msra.mxu0 %v2226
    %2292 = vmatprep.subr.bf16.mxu0 0
    %2293 = vmatpush1.bf16.msra.mxu0 %v2227
    %2294 = vmatprep.subr.bf16.mxu0 0
    %2295 = vmatpush1.bf16.msra.mxu0 %v2228
    %2296 = vmatprep.subr.bf16.mxu0 0
    %2297 = vmatpush1.bf16.msra.mxu0 %v2229
    %2298 = vmatprep.subr.bf16.mxu0 0
    %2299 = vmatpush1.bf16.msra.mxu0 %v2230
    %2300 = vmatprep.subr.bf16.mxu0 0
    %2301 = vmatpush1.bf16.msra.mxu0 %v2231
    %2302 = vmatprep.subr.bf16.mxu0 0
    %2303 = vmatpush1.bf16.msra.mxu0 %v2232
    %2304 = vmatprep.subr.bf16.mxu0 0
    %2305 = vmatpush1.bf16.msra.mxu0 %v2233
    %2306 = vmatprep.subr.bf16.mxu0 0
    %2307 = vmatpush1.bf16.msra.mxu0 %v2234
    %2308 = vmatprep.subr.bf16.mxu0 0
    %2309 = vmatpush1.bf16.msra.mxu0 %v2235
    %2310 = vmatprep.subr.bf16.mxu0 0
    %2311 = vmatpush1.bf16.msra.mxu0 %v2236
    %2312 = vmatprep.subr.bf16.mxu0 0
    %2313 = vmatpush1.bf16.msra.mxu0 %v2237
    %2314 = vmatprep.subr.bf16.mxu0 0
    %2315 = vmatpush1.bf16.msra.mxu0 %v2238
    %2316 = vmatprep.subr.bf16.mxu0 0
    %2317 = vmatpush1.bf16.msra.mxu0 %v2239
    %2318 = vmatprep.subr.bf16.mxu0 0
    %2319 = vmatpush1.bf16.msra.mxu0 %v2240
    %2320 = vmatprep.subr.bf16.mxu0 0
    %2321 = vmatpush1.bf16.msra.mxu0 %v2241
    %2322 = vmatprep.mubr.bf16.mxu0 %v2015
    %2323 = vmatmul.mubr.bf16.gmra.mrb[0].mxu0 %v2014
    %v2324 = vpop.f32.mrb[0].mxu0
    %v2325 = vadd.f32 %v2097, %v2324
    %v2326 = vpop.f32.mrb[0].mxu0
    %v2327 = vpop.f32.mrb[0].mxu0
    %v2328 = vadd.f32 %v2097, %v2327
    %v2329 = vpop.f32.mrb[0].mxu0
    %2330 = vmatprep.mubr.bf16.mxu0 %v2019
    %2331 = vmatmul.mubr.bf16.gmra.mrb[0].mxu0 %v2018
    %v2332 = vpop.f32.mrb[0].mxu0
    %v2333 = vadd.f32 %v2097, %v2332
    %v2334 = vpop.f32.mrb[0].mxu0
    %v2335 = vpop.f32.mrb[0].mxu0
    %v2336 = vadd.f32 %v2097, %v2335
    %v2337 = vpop.f32.mrb[0].mxu0
    %2338 = vmatprep.mubr.bf16.mxu0 %v2023
    %2339 = vmatmul.mubr.bf16.gmra.mrb[0].mxu0 %v2022
    %v2340 = vpop.f32.mrb[0].mxu0
    %v2341 = vadd.f32 %v2097, %v2340
    %v2342 = vpop.f32.mrb[0].mxu0
    %v2343 = vpop.f32.mrb[0].mxu0
    %v2344 = vadd.f32 %v2097, %v2343
    %v2345 = vpop.f32.mrb[0].mxu0
    %2346 = vmatprep.mubr.bf16.mxu0 %v2027
    %2347 = vmatmul.mubr.bf16.gmra.mrb[0].mxu0 %v2026
    %v2348 = vpop.f32.mrb[0].mxu0
    %v2349 = vadd.f32 %v2097, %v2348
    %v2350 = vpop.f32.mrb[0].mxu0
    %v2351 = vpop.f32.mrb[0].mxu0
    %v2352 = vadd.f32 %v2097, %v2351
    %v2353 = vpop.f32.mrb[0].mxu0
    %2354 = vdwg.mxu0
    %2355 = vmatprep.subr.bf16.mxu0 0
    %2356 = vmatpush1.bf16.msra.mxu0 %v2242
    %2357 = vmatprep.subr.bf16.mxu0 0
    %2358 = vmatpush1.bf16.msra.mxu0 %v2243
    %2359 = vmatprep.subr.bf16.mxu0 0
    %2360 = vmatpush1.bf16.msra.mxu0 %v2244
    %2361 = vmatprep.subr.bf16.mxu0 0
    %2362 = vmatpush1.bf16.msra.mxu0 %v2245
    %2363 = vmatprep.subr.bf16.mxu0 0
    %2364 = vmatpush1.bf16.msra.mxu0 %v2246
    %2365 = vmatprep.subr.bf16.mxu0 0
    %2366 = vmatpush1.bf16.msra.mxu0 %v2247
    %2367 = vmatprep.subr.bf16.mxu0 0
    %2368 = vmatpush1.bf16.msra.mxu0 %v2248
    %2369 = vmatprep.subr.bf16.mxu0 0
    %2370 = vmatpush1.bf16.msra.mxu0 %v2249
    %2371 = vmatprep.subr.bf16.mxu0 0
    %2372 = vmatpush1.bf16.msra.mxu0 %v2250
    %2373 = vmatprep.subr.bf16.mxu0 0
    %2374 = vmatpush1.bf16.msra.mxu0 %v2251
    %2375 = vmatprep.subr.bf16.mxu0 0
    %2376 = vmatpush1.bf16.msra.mxu0 %v2252
    %2377 = vmatprep.subr.bf16.mxu0 0
    %2378 = vmatpush1.bf16.msra.mxu0 %v2253
    %2379 = vmatprep.subr.bf16.mxu0 0
    %2380 = vmatpush1.bf16.msra.mxu0 %v2254
    %2381 = vmatprep.subr.bf16.mxu0 0
    %2382 = vmatpush1.bf16.msra.mxu0 %v2255
    %2383 = vmatprep.subr.bf16.mxu0 0
    %2384 = vmatpush1.bf16.msra.mxu0 %v2256
    %2385 = vmatprep.subr.bf16.mxu0 0
    %2386 = vmatpush1.bf16.msra.mxu0 %v2257
    %2387 = vmatprep.mubr.bf16.mxu0 %v2017
    %2388 = vmatmul.mubr.bf16.gmra.mrb[0].mxu0 %v2016
    %v2389 = vpop.f32.mrb[0].mxu0
    %v2390 = vadd.f32 %v2325, %v2389
    %v2391 = vpop.f32.mrb[0].mxu0
    %v2392 = vpop.f32.mrb[0].mxu0
    %v2393 = vadd.f32 %v2328, %v2392
    %v2394 = vpop.f32.mrb[0].mxu0
    %2395 = vmatprep.mubr.bf16.mxu0 %v2021
    %2396 = vmatmul.mubr.bf16.gmra.mrb[0].mxu0 %v2020
    %v2397 = vpop.f32.mrb[0].mxu0
    %v2398 = vadd.f32 %v2333, %v2397
    %v2399 = vpop.f32.mrb[0].mxu0
    %v2400 = vpop.f32.mrb[0].mxu0
    %v2401 = vadd.f32 %v2336, %v2400
    %v2402 = vpop.f32.mrb[0].mxu0
    %2403 = vmatprep.mubr.bf16.mxu0 %v2025
    %2404 = vmatmul.mubr.bf16.gmra.mrb[0].mxu0 %v2024
    %v2405 = vpop.f32.mrb[0].mxu0
    %v2406 = vadd.f32 %v2341, %v2405
    %v2407 = vpop.f32.mrb[0].mxu0
    %v2408 = vpop.f32.mrb[0].mxu0
    %v2409 = vadd.f32 %v2344, %v2408
    %v2410 = vpop.f32.mrb[0].mxu0
    %2411 = vmatprep.mubr.bf16.mxu0 %v2029
    %2412 = vmatmul.mubr.bf16.gmra.mrb[0].mxu0 %v2028
    %v2413 = vpop.f32.mrb[0].mxu0
    %v2414 = vadd.f32 %v2349, %v2413
    %v2415 = vpop.f32.mrb[0].mxu0
    %v2416 = vpop.f32.mrb[0].mxu0
    %v2417 = vadd.f32 %v2352, %v2416
    %v2418 = vpop.f32.mrb[0].mxu0
    %2419 = vdwg.mxu0
    %v2420 = vadd.f32 %v1610, %v2390
    %v2421 = vadd.f32 %v1611, %v2393
    %v2422 = vadd.f32 %v1612, %v2398
    %v2423 = vadd.f32 %v1613, %v2401
    %v2424 = vadd.f32 %v1614, %v2406
    %v2425 = vadd.f32 %v1615, %v2409
    %v2426 = vadd.f32 %v1616, %v2414
    %v2427 = vadd.f32 %v1617, %v2417
    %2428 = vadd.xlane.f32.xlu0 %v2420
    %v2429 = vpop.xlane.xlu0 %2428
    %2430 = vadd.xlane.f32.xlu0 %v2421
    %v2431 = vpop.xlane.xlu0 %2430
    %2432 = vadd.xlane.f32.xlu0 %v2422
    %v2433 = vpop.xlane.xlu0 %2432
    %2434 = vadd.xlane.f32.xlu0 %v2423
    %v2435 = vpop.xlane.xlu0 %2434
    %2436 = vadd.xlane.f32.xlu0 %v2424
    %v2437 = vpop.xlane.xlu0 %2436
    %2438 = vadd.xlane.f32.xlu0 %v2425
    %v2439 = vpop.xlane.xlu0 %2438
    %2440 = vadd.xlane.f32.xlu0 %v2426
    %v2441 = vpop.xlane.xlu0 %2440
    %2442 = vadd.xlane.f32.xlu0 %v2427
    %v2443 = vpop.xlane.xlu0 %2442
    %v2444 = vmul.f32 %v2429, %v1521
    %v2445 = vmul.f32 %v2431, %v1521
    %v2446 = vmul.f32 %v2433, %v1521
    %v2447 = vmul.f32 %v2435, %v1521
    %v2448 = vmul.f32 %v2437, %v1521
    %v2449 = vmul.f32 %v2439, %v1521
    %v2450 = vmul.f32 %v2441, %v1521
    %v2451 = vmul.f32 %v2443, %v1521
    %v2452 = vsub.f32 %v2420, %v2444
    %v2453 = vsub.f32 %v2421, %v2445
    %v2454 = vsub.f32 %v2422, %v2446
    %v2455 = vsub.f32 %v2423, %v2447
    %v2456 = vsub.f32 %v2424, %v2448
    %v2457 = vsub.f32 %v2425, %v2449
    %v2458 = vsub.f32 %v2426, %v2450
    %v2459 = vsub.f32 %v2427, %v2451
    %v2460 = vmul.f32 %v2452, %v2452
    %v2461 = vmul.f32 %v2453, %v2453
    %v2462 = vmul.f32 %v2454, %v2454
    %v2463 = vmul.f32 %v2455, %v2455
    %v2464 = vmul.f32 %v2456, %v2456
    %v2465 = vmul.f32 %v2457, %v2457
    %v2466 = vmul.f32 %v2458, %v2458
    %v2467 = vmul.f32 %v2459, %v2459
    %2468 = vadd.xlane.f32.xlu0 %v2460
    %v2469 = vpop.xlane.xlu0 %2468
    %2470 = vadd.xlane.f32.xlu0 %v2461
    %v2471 = vpop.xlane.xlu0 %2470
    %2472 = vadd.xlane.f32.xlu0 %v2462
    %v2473 = vpop.xlane.xlu0 %2472
    %2474 = vadd.xlane.f32.xlu0 %v2463
    %v2475 = vpop.xlane.xlu0 %2474
    %2476 = vadd.xlane.f32.xlu0 %v2464
    %v2477 = vpop.xlane.xlu0 %2476
    %2478 = vadd.xlane.f32.xlu0 %v2465
    %v2479 = vpop.xlane.xlu0 %2478
    %2480 = vadd.xlane.f32.xlu0 %v2466
    %v2481 = vpop.xlane.xlu0 %2480
    %2482 = vadd.xlane.f32.xlu0 %v2467
    %v2483 = vpop.xlane.xlu0 %2482
    %v2484 = vmul.f32 %v2469, %v1521
    %v2485 = vmul.f32 %v2471, %v1521
    %v2486 = vmul.f32 %v2473, %v1521
    %v2487 = vmul.f32 %v2475, %v1521
    %v2488 = vmul.f32 %v2477, %v1521
    %v2489 = vmul.f32 %v2479, %v1521
    %v2490 = vmul.f32 %v2481, %v1521
    %v2491 = vmul.f32 %v2483, %v1521
    %v2492 = vadd.f32 %v2484, 1e-12
    %v2493 = vadd.f32 %v2485, 1e-12
    %v2494 = vadd.f32 %v2486, 1e-12
    %v2495 = vadd.f32 %v2487, 1e-12
    %v2496 = vadd.f32 %v2488, 1e-12
    %v2497 = vadd.f32 %v2489, 1e-12
    %v2498 = vadd.f32 %v2490, 1e-12
    %v2499 = vadd.f32 %v2491, 1e-12
    %v2500 = vrsqrt.pop %v2492
    %v2501 = vrsqrt.pop %v2493
    %v2502 = vrsqrt.pop %v2494
    %v2503 = vrsqrt.pop %v2495
    %v2504 = vrsqrt.pop %v2496
    %v2505 = vrsqrt.pop %v2497
    %v2506 = vrsqrt.pop %v2498
    %v2507 = vrsqrt.pop %v2499
    %v2508 = vmul.f32 %v2452, %v2500
    %v2509 = vmul.f32 %v2453, %v2501
    %v2510 = vmul.f32 %v2454, %v2502
    %v2511 = vmul.f32 %v2455, %v2503
    %v2512 = vmul.f32 %v2456, %v2504
    %v2513 = vmul.f32 %v2457, %v2505
    %v2514 = vmul.f32 %v2458, %v2506
    %v2515 = vmul.f32 %v2459, %v2507
    %v2516 = vlaneseq
    %v2517 = vshrl.u32 %v2516, 7
    %v2518 = vsub.s32 7, %v2517
    %v2519 = vrot.slane %v154, %v2518
    %v2520 = vmul.f32 %v2508, %v2519
    %v2521 = vmul.f32 %v2509, %v2519
    %v2522 = vmul.f32 %v2510, %v2519
    %v2523 = vmul.f32 %v2511, %v2519
    %v2524 = vmul.f32 %v2512, %v2519
    %v2525 = vmul.f32 %v2513, %v2519
    %v2526 = vmul.f32 %v2514, %v2519
    %v2527 = vmul.f32 %v2515, %v2519
    %v2528 = vlaneseq
    %v2529 = vshrl.u32 %v2528, 7
    %v2530 = vsub.s32 0, %v2529
    %v2531 = vrot.slane %v155, %v2530
    %v2532 = vadd.f32 %v2520, %v2531
    %v2533 = vadd.f32 %v2521, %v2531
    %v2534 = vadd.f32 %v2522, %v2531
    %v2535 = vadd.f32 %v2523, %v2531
    %v2536 = vadd.f32 %v2524, %v2531
    %v2537 = vadd.f32 %v2525, %v2531
    %v2538 = vadd.f32 %v2526, %v2531
    %v2539 = vadd.f32 %v2527, %v2531
    %v2540 = vpack.c.bf16 %v2532, %v2532
    %v2541 = vpack.c.bf16 %v2533, %v2533
    %v2542 = vpack.c.bf16 %v2534, %v2534
    %v2543 = vpack.c.bf16 %v2535, %v2535
    %v2544 = vpack.c.bf16 %v2536, %v2536
    %v2545 = vpack.c.bf16 %v2537, %v2537
    %v2546 = vpack.c.bf16 %v2538, %v2538
    %v2547 = vpack.c.bf16 %v2539, %v2539
    %v2548 = vld [vmem:[#allocation13] sm:$0xf]
    %v2549 = vld [vmem:[#allocation13 + $0x4] sm:$0xf]
    %v2550 = vld [vmem:[#allocation13 + $0x8] sm:$0xf]
    %v2551 = vld [vmem:[#allocation13 + $0xc] sm:$0xf]
    %v2552 = vld [vmem:[#allocation13 + $0x10] sm:$0xf]
    %v2553 = vld [vmem:[#allocation13 + $0x14] sm:$0xf]
    %v2554 = vld [vmem:[#allocation13 + $0x18] sm:$0xf]
    %v2555 = vld [vmem:[#allocation13 + $0x1c] sm:$0xf]
    %v2556 = vld [vmem:[#allocation13 + $0x20] sm:$0xf]
    %v2557 = vld [vmem:[#allocation13 + $0x24] sm:$0xf]
    %v2558 = vld [vmem:[#allocation13 + $0x28] sm:$0xf]
    %v2559 = vld [vmem:[#allocation13 + $0x2c] sm:$0xf]
    %v2560 = vld [vmem:[#allocation13 + $0x30] sm:$0xf]
    %v2561 = vld [vmem:[#allocation13 + $0x34] sm:$0xf]
    %v2562 = vld [vmem:[#allocation13 + $0x38] sm:$0xf]
    %v2563 = vld [vmem:[#allocation13 + $0x3c] sm:$0xf]
    %v2564 = vlaneseq
    %v2565 = vshrl.u32 %v2564, 7
    %v2566 = vsub.s32 2, %v2565
    %v2567 = vrot.slane %v155, %v2566
    %v2576 = vunpack.c.l.b16 %v2540
    %v2577 = vunpack.c.l.b16 %v2541
    %v2578 = vunpack.c.l.b16 %v2542
    %v2579 = vunpack.c.l.b16 %v2543
    %v2580 = vunpack.c.l.b16 %v2544
    %v2581 = vunpack.c.l.b16 %v2545
    %v2582 = vunpack.c.l.b16 %v2546
    %v2583 = vunpack.c.l.b16 %v2547
    %v2584 = vrot.slane %v2577, 7
    %vm2585 = vcmask 1041409
    %v2586 = vsel %vm2585, %v2584, %v2576
    %v2587 = vrot.slane %v2578, 6
    %vm2588 = vcmask 1042434
    %v2589 = vsel %vm2588, %v2587, %v2586
    %v2590 = vrot.slane %v2579, 5
    %vm2591 = vcmask 1043459
    %v2592 = vsel %vm2591, %v2590, %v2589
    %v2593 = vrot.slane %v2580, 4
    %vm2594 = vcmask 1044484
    %v2595 = vsel %vm2594, %v2593, %v2592
    %v2596 = vrot.slane %v2581, 3
    %vm2597 = vcmask 1045509
    %v2598 = vsel %vm2597, %v2596, %v2595
    %v2599 = vrot.slane %v2582, 2
    %vm2600 = vcmask 1046534
    %v2601 = vsel %vm2600, %v2599, %v2598
    %v2602 = vrot.slane %v2583, 1
    %vm2603 = vcmask 1047559
    %v2604 = vsel %vm2603, %v2602, %v2601
    %v2605 = vpack.c.b16 %v2604, %v2604
    %v2623 = vunpack.c.l.b16 %v2548
    %v2624 = vunpack.c.l.b16 %v2549
    %v2625 = vunpack.c.l.b16 %v2550
    %v2626 = vunpack.c.l.b16 %v2551
    %v2627 = vunpack.c.l.b16 %v2552
    %v2628 = vunpack.c.l.b16 %v2553
    %v2629 = vunpack.c.l.b16 %v2554
    %v2630 = vunpack.c.l.b16 %v2555
    %v2631 = vunpack.c.l.b16 %v2556
    %v2632 = vunpack.c.l.b16 %v2557
    %v2633 = vunpack.c.l.b16 %v2558
    %v2634 = vunpack.c.l.b16 %v2559
    %v2635 = vunpack.c.l.b16 %v2560
    %v2636 = vunpack.c.l.b16 %v2561
    %v2637 = vunpack.c.l.b16 %v2562
    %v2638 = vunpack.c.l.b16 %v2563
    %v2639 = vpack.c.b16 %v2624, %v2623
    %v2640 = vpack.c.b16 %v2626, %v2625
    %v2641 = vpack.c.b16 %v2628, %v2627
    %v2642 = vpack.c.b16 %v2630, %v2629
    %v2643 = vpack.c.b16 %v2632, %v2631
    %v2644 = vpack.c.b16 %v2634, %v2633
    %v2645 = vpack.c.b16 %v2636, %v2635
    %v2646 = vpack.c.b16 %v2638, %v2637
    %2655 = vmatprep.subr.bf16.mxu0 0
    %2656 = vmatpush1.bf16.msra.mxu0 %v2639
    %2657 = vmatprep.subr.bf16.mxu0 0
    %2658 = vmatpush1.bf16.msra.mxu0 %v2640
    %2659 = vmatprep.subr.bf16.mxu0 0
    %2660 = vmatpush1.bf16.msra.mxu0 %v2641
    %2661 = vmatprep.subr.bf16.mxu0 0
    %2662 = vmatpush1.bf16.msra.mxu0 %v2642
    %2663 = vmatprep.subr.bf16.mxu0 0
    %2664 = vmatpush1.bf16.msra.mxu0 %v2643
    %2665 = vmatprep.subr.bf16.mxu0 0
    %2666 = vmatpush1.bf16.msra.mxu0 %v2644
    %2667 = vmatprep.subr.bf16.mxu0 0
    %2668 = vmatpush1.bf16.msra.mxu0 %v2645
    %2669 = vmatprep.subr.bf16.mxu0 0
    %2670 = vmatpush1.bf16.msra.mxu0 %v2646
    %2671 = vmatprep.subr.bf16.mxu0 0
    %2672 = vmatpush1.bf16.msra.mxu0 0
    %2673 = vmatprep.subr.bf16.mxu0 0
    %2674 = vmatpush1.bf16.msra.mxu0 0
    %2675 = vmatprep.subr.bf16.mxu0 0
    %2676 = vmatpush1.bf16.msra.mxu0 0
    %2677 = vmatprep.subr.bf16.mxu0 0
    %2678 = vmatpush1.bf16.msra.mxu0 0
    %2679 = vmatprep.subr.bf16.mxu0 0
    %2680 = vmatpush1.bf16.msra.mxu0 0
    %2681 = vmatprep.subr.bf16.mxu0 0
    %2682 = vmatpush1.bf16.msra.mxu0 0
    %2683 = vmatprep.subr.bf16.mxu0 0
    %2684 = vmatpush1.bf16.msra.mxu0 0
    %2685 = vmatprep.subr.bf16.mxu0 0
    %2686 = vmatpush1.bf16.msra.mxu0 0
    %2687 = vmatprep.mubr.bf16.mxu0 0
    %2688 = vmatmul.mubr.bf16.gmra.mrb[0].mxu0 %v2605
    %v2689 = vpop.f32.mrb[0].mxu0
    %v2690 = vadd.f32 %v2567, %v2689
    %v2691 = vpop.f32.mrb[0].mxu0
    %v2692 = vpop.f32.mrb[0].mxu0
    %v2693 = vpop.f32.mrb[0].mxu0
    %2694 = vdwg.mxu0
    %v2695 = vmax.f32 %v2690, 0.0
    %v2696 = vpack.c.bf16 %v2695, %v2695
    %v2697 = vld [vmem:[#allocation14] sm:$0xf]
    %v2698 = vld [vmem:[#allocation14 + $0x4] sm:$0xf]
    %v2699 = vld [vmem:[#allocation14 + $0x8] sm:$0xf]
    %v2700 = vld [vmem:[#allocation14 + $0xc] sm:$0xf]
    %v2701 = vld [vmem:[#allocation14 + $0x10] sm:$0xf]
    %v2702 = vld [vmem:[#allocation14 + $0x14] sm:$0xf]
    %v2703 = vld [vmem:[#allocation14 + $0x18] sm:$0xf]
    %v2704 = vld [vmem:[#allocation14 + $0x1c] sm:$0xf]
    %v2705 = vld [vmem:[#allocation14 + $0x20] sm:$0xf]
    %v2706 = vld [vmem:[#allocation14 + $0x24] sm:$0xf]
    %v2707 = vld [vmem:[#allocation14 + $0x28] sm:$0xf]
    %v2708 = vld [vmem:[#allocation14 + $0x2c] sm:$0xf]
    %v2709 = vld [vmem:[#allocation14 + $0x30] sm:$0xf]
    %v2710 = vld [vmem:[#allocation14 + $0x34] sm:$0xf]
    %v2711 = vld [vmem:[#allocation14 + $0x38] sm:$0xf]
    %v2712 = vld [vmem:[#allocation14 + $0x3c] sm:$0xf]
    %v2713 = vlaneseq
    %v2714 = vshrl.u32 %v2713, 7
    %v2715 = vsub.s32 1, %v2714
    %v2716 = vrot.slane %v155, %v2715
    %v2733 = vunpack.c.l.b16 %v2697
    %v2734 = vunpack.c.l.b16 %v2698
    %v2735 = vunpack.c.l.b16 %v2699
    %v2736 = vunpack.c.l.b16 %v2700
    %v2737 = vunpack.c.l.b16 %v2701
    %v2738 = vunpack.c.l.b16 %v2702
    %v2739 = vunpack.c.l.b16 %v2703
    %v2740 = vunpack.c.l.b16 %v2704
    %v2741 = vunpack.c.l.b16 %v2705
    %v2742 = vunpack.c.l.b16 %v2706
    %v2743 = vunpack.c.l.b16 %v2707
    %v2744 = vunpack.c.l.b16 %v2708
    %v2745 = vunpack.c.l.b16 %v2709
    %v2746 = vunpack.c.l.b16 %v2710
    %v2747 = vunpack.c.l.b16 %v2711
    %v2748 = vunpack.c.l.b16 %v2712
    %v2749 = vpack.c.b16 %v2734, %v2733
    %v2750 = vpack.c.b16 %v2736, %v2735
    %v2751 = vpack.c.b16 %v2738, %v2737
    %v2752 = vpack.c.b16 %v2740, %v2739
    %v2753 = vpack.c.b16 %v2742, %v2741
    %v2754 = vpack.c.b16 %v2744, %v2743
    %v2755 = vpack.c.b16 %v2746, %v2745
    %v2756 = vpack.c.b16 %v2748, %v2747
    %2765 = vmatprep.subr.bf16.mxu0 0
    %2766 = vmatpush1.bf16.msra.mxu0 %v2749
    %2767 = vmatprep.subr.bf16.mxu0 0
    %2768 = vmatpush1.bf16.msra.mxu0 %v2750
    %2769 = vmatprep.subr.bf16.mxu0 0
    %2770 = vmatpush1.bf16.msra.mxu0 %v2751
    %2771 = vmatprep.subr.bf16.mxu0 0
    %2772 = vmatpush1.bf16.msra.mxu0 %v2752
    %2773 = vmatprep.subr.bf16.mxu0 0
    %2774 = vmatpush1.bf16.msra.mxu0 %v2753
    %2775 = vmatprep.subr.bf16.mxu0 0
    %2776 = vmatpush1.bf16.msra.mxu0 %v2754
    %2777 = vmatprep.subr.bf16.mxu0 0
    %2778 = vmatpush1.bf16.msra.mxu0 %v2755
    %2779 = vmatprep.subr.bf16.mxu0 0
    %2780 = vmatpush1.bf16.msra.mxu0 %v2756
    %2781 = vmatprep.subr.bf16.mxu0 0
    %2782 = vmatpush1.bf16.msra.mxu0 0
    %2783 = vmatprep.subr.bf16.mxu0 0
    %2784 = vmatpush1.bf16.msra.mxu0 0
    %2785 = vmatprep.subr.bf16.mxu0 0
    %2786 = vmatpush1.bf16.msra.mxu0 0
    %2787 = vmatprep.subr.bf16.mxu0 0
    %2788 = vmatpush1.bf16.msra.mxu0 0
    %2789 = vmatprep.subr.bf16.mxu0 0
    %2790 = vmatpush1.bf16.msra.mxu0 0
    %2791 = vmatprep.subr.bf16.mxu0 0
    %2792 = vmatpush1.bf16.msra.mxu0 0
    %2793 = vmatprep.subr.bf16.mxu0 0
    %2794 = vmatpush1.bf16.msra.mxu0 0
    %2795 = vmatprep.subr.bf16.mxu0 0
    %2796 = vmatpush1.bf16.msra.mxu0 0
    %2797 = vmatprep.mubr.bf16.mxu0 0
    %2798 = vmatmul.mubr.bf16.gmra.mrb[0].mxu0 %v2696
    %v2799 = vpop.f32.mrb[0].mxu0
    %v2800 = vadd.f32 %v2716, %v2799
    %v2801 = vpop.f32.mrb[0].mxu0
    %v2802 = vpop.f32.mrb[0].mxu0
    %v2803 = vpop.f32.mrb[0].mxu0
    %2804 = vdwg.mxu0
    %2805 = vst [vmem:[#allocation16] sm:$0xff] %v2800
    // Predicated region
    $region74: #{tpu_custom_call.1} parent=1 // pred_check
      _
    $region75: #{tpu_custom_call.1} parent=1 // pred_check_branch
      %2807 = sbr.rel (0) target = $region77
    $region76: #{tpu_custom_call.1} parent=1 // pred_region
      %s2809 = ssub.s32 128, 128
      %2810 = vsyncadd [#allocation4], %s2809
      %s2812 = sshll.u32 [#allocation16], 4
      %s2813 = int_to_ptr.vmem [resolvable:$true] %s2812
      %2815 = dma.vmem_to_hbm [thread:$0]  %s2813, 128, %s10, [#allocation4]
    $region77: #{tpu_custom_call.1} parent=1 // pred_fallthru
      _
    // Predicated region
    $region78: #{tpu_custom_call.1} parent=1 // pred_check
      _
    $region79: #{tpu_custom_call.1} parent=1 // pred_check_branch
      %2817 = sbr.rel (0) target = $region81
    $region80: #{tpu_custom_call.1} parent=1 // pred_region
      %2818 = dma.done [#allocation4], 128
    $region81: #{tpu_custom_call.1} parent=1 // pred_fallthru
      _
    %2819 = vsyncpa [#allocation3], 1
    %2820 = vsyncpa [#allocation6], 1
    %2821 = vsyncpa [#allocation9], 1
    %2822 = vsyncpa [#allocation12], 1
    %2823 = vsyncpa [#allocation15], 1
    %2824 = vsyncpa [#allocation4], 1

</llo_original>
